<compile_context>
chip_gen: v6e
topology: v6e:2x2x1
jax: 0.10.0
libtpu: 0.0.40
codegen_flags: <defaults>
</compile_context>

<pallas_src>
import math

import jax
import jax.numpy as jnp
import numpy as np
from jax import lax
from jax.experimental import pallas as pl
from jax.experimental.pallas import tpu as pltpu


# ------------------------------------------------------------------------------------------------
# kernel bodies
# ------------------------------------------------------------------------------------------------
def _make_node_kernel(num_layers):
    """Graph-wise LayerNorm chain + per-layer stacked node projections, all layers fused."""

    def kernel(s_ref, bat_ref, invn_ref, lnw_ref, lnb_ref, wxij_ref, b1_ref,
               s_out_ref, pij_ref):
        f32 = jnp.float32
        bf16 = jnp.bfloat16
        ln_eps = 1e-6

        s = s_ref[...]                      # (N, S)  f32
        bat = bat_ref[...]                  # (N, B)  f32 one-hot graph membership
        inv_n = invn_ref[...]               # (B, 1)  1 / nodes_per_graph
        n_nodes, feat = s.shape

        for l in range(num_layers):
            # ---- graph-wise LayerNorm: one fused segment-sum matmul, one fused broadcast ------
            ss = jnp.concatenate([s, s * s], axis=-1)                          # (N, 2S)
            seg = lax.dot_general(bat, ss, (((0,), (0,)), ((), ())),
                                  preferred_element_type=f32)                  # (B, 2S)
            g_mean = jnp.mean(seg[:, :feat] * inv_n, axis=-1, keepdims=True)   # (B, 1)
            g_msq = jnp.mean(seg[:, feat:] * inv_n, axis=-1, keepdims=True)    # (B, 1)
            g_var = jnp.maximum(g_msq - g_mean * g_mean, ln_eps)
            inv_std = lax.rsqrt(g_var)                                         # EUP rsqrt
            ms = jnp.dot(bat, jnp.concatenate([g_mean, inv_std], axis=-1),
                         preferred_element_type=f32)                           # (N, 2) shift|scale
            s_ln = (s - ms[:, 0:1]) * ms[:, 1:2] * lnw_ref[l] + lnb_ref[l]     # (N, S) f32

            # ---- node halves of the edge-MLP first layer: one bf16 (N,S)x(S,2S) matmul --------
            pij = jnp.dot(s_ln.astype(bf16), wxij_ref[l],
                          preferred_element_type=f32)                          # (N, 2S) f32
            pij_ref[l, :n_nodes, :] = (pij[:, :feat] + b1_ref[l]).astype(bf16)  # Pi (b1 folded)
            pij_ref[l, n_nodes:, :] = pij[:, feat:].astype(bf16)                # Pj

            s = s_ln

        s_out_ref[...] = s

    return kernel


def _make_edge_kernel(num_layers):
    """Per-edge-tile chain across all layers; gathers via one in-kernel one-hot bf16 MXU matmul."""

    def kernel(idx_ref, e_ref, pij_ref, w1e_ref, w2_ref, b2_ref, e_out_ref):
        f32 = jnp.float32
        bf16 = jnp.bfloat16
        dot = lambda a, b: jnp.dot(a, b, preferred_element_type=f32)

        idx = idx_ref[...]                                          # (tE, 2) int32: [dst | src+N]
        two_n = pij_ref.shape[1]
        iota = lax.broadcasted_iota(jnp.int32, (idx.shape[0], two_n), 1)
        # combined gather one-hot, built once per tile and reused by every layer
        oh = ((iota == idx[:, 0:1]) | (iota == idx[:, 1:2])).astype(bf16)      # (tE, 2N)

        e = e_ref[...]                                              # (tE, De) f32 residual acc
        for l in range(num_layers):
            pre = dot(oh, pij_ref[l]) + dot(e.astype(bf16), w1e_ref[l])        # (tE, S)  f32
            h = (pre * jax.nn.sigmoid(pre)).astype(bf16)                       # SiLU
            e = dot(h, w2_ref[l]) + b2_ref[l] + e                              # (tE, De) f32
        e_out_ref[...] = e

    return kernel


# ------------------------------------------------------------------------------------------------
# wrapper
# ------------------------------------------------------------------------------------------------
def _nbytes(shape, dtype):
    n = 1
    for d in shape:
        n *= int(d)
    return n * jnp.dtype(dtype).itemsize


def _vmem_limit(resident_bytes):
    """Actual resident bytes + headroom, capped safely below physical VMEM per TensorCore."""
    try:
        phys = int(pltpu.get_tpu_info().vmem_capacity_bytes)   # 64 MiB v7x, 128 MiB v5e/v6e
    except Exception:
        phys = 64 << 20
    cap = int(0.75 * phys)
    return int(min(max(int(resident_bytes * 1.5) + (2 << 20), 8 << 20), cap))


def topo_edge_gnn_pallas(params, s, edge_attr, edge_index, batch, cfg):
    f32, bf16 = jnp.float32, jnp.bfloat16
    N, S = s.shape
    E, De = edge_attr.shape
    L = int(cfg["num_layers"])
    B = int(cfg["num_graphs"])              # static (no device sync; jit-friendly)

    # ---- node-side graph structure (tiny) ------------------------------------------------------
    n_pad = pl.cdiv(N, 8) * 8               # sublane-align the Pi/Pj row split
    bat_oh = jax.nn.one_hot(batch, B, dtype=f32)                       # (N, B)
    bat_oh = jnp.pad(bat_oh, ((0, n_pad - N), (0, 0)))                 # padded nodes: no graph
    counts = jnp.sum(bat_oh, axis=0)[:, None]                          # (B, 1)
    inv_n = 1.0 / jnp.maximum(counts, 1.0)
    s_in = jnp.pad(s.astype(f32), ((0, n_pad - N), (0, 0)))

    # ---- edge-side: indices only — the one-hot is built inside the kernel -----------------------
    tile_e = int(cfg.get("edge_tile", 256))
    e_pad = pl.cdiv(E, tile_e) * tile_e
    pad = e_pad - E
    # (E_pad, 2) int32: col0 = dst (i), col1 = src (j) + n_pad  (combined one-hot column index)
    idx = jnp.stack([edge_index[1], edge_index[0] + n_pad], axis=-1).astype(jnp.int32)
    idx = jnp.pad(idx, ((0, pad), (0, 0)))
    e0 = jnp.pad(edge_attr.astype(f32), ((0, pad), (0, 0)))
    # NOTE: padded edge rows compute garbage (gather node 0, accumulate b2) — sliced off below.

    # ---- stacked per-layer weights (bf16 MXU operands; biases / LN affine stay f32) -------------
    stk = lambda name, dt: jnp.stack(
        [params["layers"][l][name].astype(dt) for l in range(L)], axis=0)
    lnw, lnb = stk("ln_w", f32), stk("ln_b", f32)                           # (L, 1, S)
    wxij = jnp.stack(
        [jnp.concatenate([params["layers"][l]["w_xi"], params["layers"][l]["w_xj"]],
                         axis=-1).astype(bf16) for l in range(L)], axis=0)  # (L, S, 2S)
    b1 = stk("b1", f32)                                                      # (L, 1, S)
    w1e = stk("w_e", bf16)                                                   # (L, De, S)
    w2 = stk("w2", bf16)                                                     # (L, S, De)
    b2 = stk("b2", f32)                                                      # (L, 1, De)

    vmem = pl.BlockSpec(memory_space=pltpu.MemorySpace.VMEM)

    # ---- phase 1: node kernel (gridless; node-sized tensors are tiny here) ----------------------
    # TODO(synk): tile by whole graphs (parallel grid) when N is large / to use both v7x cores.
    node_inputs = [s_in, bat_oh, inv_n, lnw, lnb, wxij, b1]
    node_in_bytes = sum(_nbytes(a.shape, a.dtype) for a in node_inputs)
    node_out_bytes = _nbytes((n_pad, S), f32) + _nbytes((L, 2 * n_pad, S), bf16)
    s_out, pij = pl.pallas_call(
        _make_node_kernel(L),
        out_shape=(jax.ShapeDtypeStruct((n_pad, S), f32),
                   jax.ShapeDtypeStruct((L, 2 * n_pad, S), bf16)),
        in_specs=[vmem] * len(node_inputs),
        out_specs=(vmem, vmem),
        compiler_params=pltpu.CompilerParams(
            vmem_limit_bytes=_vmem_limit(2 * (node_in_bytes + node_out_bytes))),
    )(*node_inputs)

    # ---- phase 2: edge kernel, 1-D "parallel" grid over edge tiles ------------------------------
    const = lambda shape: pl.BlockSpec(shape, lambda i: (0,) * len(shape))
    const_bytes = (_nbytes((L, 2 * n_pad, S), bf16) + _nbytes((L, De, S), bf16)
                   + _nbytes((L, S, De), bf16) + _nbytes((L, 1, De), f32))
    tile_bytes = _nbytes((tile_e, 2), jnp.int32) + 2 * _nbytes((tile_e, De), f32)
    scratch_bytes = _nbytes((tile_e, 2 * n_pad), bf16) + 3 * _nbytes((tile_e, S), f32)
    edge_vmem = _vmem_limit(2 * const_bytes + 2 * tile_bytes + scratch_bytes)

    e_out = pl.pallas_call(
        _make_edge_kernel(L),
        out_shape=jax.ShapeDtypeStruct((e_pad, De), f32),
        grid=(e_pad // tile_e,),
        in_specs=[
            pl.BlockSpec((tile_e, 2), lambda i: (i, 0)),       # edge index tile (int32)
            pl.BlockSpec((tile_e, De), lambda i: (i, 0)),      # edge_attr tile
            const((L, 2 * n_pad, S)),                          # Pi;Pj stacked (resident)
            const((L, De, S)),                                 # W1_e
            const((L, S, De)),                                 # W2
            const((L, 1, De)),                                 # b2
        ],
        out_specs=pl.BlockSpec((tile_e, De), lambda i: (i, 0)),
        compiler_params=pltpu.CompilerParams(
            dimension_semantics=("parallel",),
            vmem_limit_bytes=edge_vmem),
    )(idx, e0, pij, w1e, w2, b2)

    return {"s": s_out[:N], "e": e_out[:E]}


# ------------------------------------------------------------------------------------------------
# independent plain-JAX reference (index gathers, f32 everywhere, textbook two-pass LayerNorm)
# ------------------------------------------------------------------------------------------------
def topo_edge_gnn_reference(params, s, edge_attr, edge_index, batch, num_layers):
    f32 = jnp.float32
    src, dst = edge_index[0], edge_index[1]
    B = int(batch.max()) + 1
    N = s.shape[0]
    counts = jax.ops.segment_sum(jnp.ones((N,), f32), batch, num_segments=B)[:, None]
    s = s.astype(f32)
    e = edge_attr.astype(f32)
    for l in range(num_layers):
        p = params["layers"][l]
        mean_pf = jax.ops.segment_sum(s, batch, num_segments=B) / counts
        g_mean = jnp.mean(mean_pf, axis=-1, keepdims=True)                 # (B, 1)
        s_c = s - g_mean[batch]
        var_pf = jax.ops.segment_sum(s_c * s_c, batch, num_segments=B) / counts
        g_var = jnp.maximum(jnp.mean(var_pf, axis=-1, keepdims=True), 1e-6)
        s_ln = s_c / jnp.sqrt(g_var)[batch] * p["ln_w"] + p["ln_b"]

        pi = s_ln @ p["w_xi"] + p["b1"]
        pj = s_ln @ p["w_xj"]
        pre = pi[dst] + pj[src] + e @ p["w_e"]
        h = pre * jax.nn.sigmoid(pre)
        e = h @ p["w2"] + p["b2"] + e
        s = s_ln
    return {"s": s, "e": e}


# ------------------------------------------------------------------------------------------------
# deterministic synthetic parameters
# ------------------------------------------------------------------------------------------------
def init_params(key, in_dim, edge_dim, num_layers):
    layers = []
    for l in range(num_layers):
        ks = jax.random.split(jax.random.fold_in(key, l), 8)

        def w(kk, fin, fout):
            return jax.random.normal(kk, (fin, fout), jnp.float32) / math.sqrt(fin)

        layers.append({
            "ln_w": 1.0 + 0.1 * jax.random.normal(ks[6], (1, in_dim), jnp.float32),
            "ln_b": 0.05 * jax.random.normal(ks[7], (1, in_dim), jnp.float32),
            "w_xi": w(ks[0], in_dim, in_dim),
            "w_xj": w(ks[1], in_dim, in_dim),
            "w_e": w(ks[2], edge_dim, in_dim),
            "b1": 0.01 * jax.random.normal(ks[3], (1, in_dim), jnp.float32),
            "w2": w(ks[4], in_dim, edge_dim),
            "b2": 0.01 * jax.random.normal(ks[5], (1, edge_dim), jnp.float32),
        })
    return {"layers": layers}


# ------------------------------------------------------------------------------------------------
if __name__ == "__main__":
    IN_DIM, EDGE_DIM, NUM_LAYERS = 128, 16, 3          # module default edge_dim=16 (small demo)
    nodes_per_graph, num_graphs = 16, 2
    N = nodes_per_graph * num_graphs
    # edge_tile=256 (review: >=256); demo still yields a 2-tile grid so both v7x cores get work.
    cfg = {"num_layers": NUM_LAYERS, "num_graphs": num_graphs, "edge_tile": 256}

    key = jax.random.PRNGKey(0)
    k_s, k_e, k_p = jax.random.split(key, 3)

    batch = jnp.repeat(jnp.arange(num_graphs, dtype=jnp.int32), nodes_per_graph)

    # fully-connected intra-graph edges w/o self loops (PyG convention: row0=src(j), row1=dst(i))
    src, dst = [], []
    for g in range(num_graphs):
        base = g * nodes_per_graph
        for a in range(nodes_per_graph):
            for b in range(nodes_per_graph):
                if a != b:
                    src.append(base + a)
                    dst.append(base + b)
    edge_index = jnp.array([src, dst], dtype=jnp.int32)
    E = edge_index.shape[1]

    s = jax.random.normal(k_s, (N, IN_DIM), jnp.float32)
    edge_attr = 0.5 * jax.random.normal(k_e, (E, EDGE_DIM), jnp.float32)
    params = init_params(k_p, IN_DIM, EDGE_DIM, NUM_LAYERS)

    out = topo_edge_gnn_pallas(params, s, edge_attr, edge_index, batch, cfg)
    s_out = jax.block_until_ready(out["s"])
    e_out = jax.block_until_ready(out["e"])

    ref = topo_edge_gnn_reference(params, s, edge_attr, edge_index, batch, NUM_LAYERS)

    assert s_out.shape == (N, IN_DIM) and e_out.shape == (E, EDGE_DIM)
    assert bool(jnp.all(jnp.isfinite(s_out))) and bool(jnp.all(jnp.isfinite(e_out)))
    # s path is pure f32 (only Pi/Pj projections go bf16); e path uses bf16 MXU operands.
    np.testing.assert_allclose(np.asarray(s_out), np.asarray(ref["s"]), rtol=2e-3, atol=2e-3)
    np.testing.assert_allclose(np.asarray(e_out), np.asarray(ref["e"]), rtol=5e-2, atol=5e-2)

    print("KERNEL_OK")
</pallas_src>

<mosaic_0001>
module attributes {stable_mosaic.version = 11 : i64} {
  func.func @kernel(%arg0: memref<32x128xf32, #tpu.memory_space<vmem>>, %arg1: memref<32x2xf32, #tpu.memory_space<vmem>>, %arg2: memref<2x1xf32, #tpu.memory_space<vmem>>, %arg3: memref<3x1x128xf32, #tpu.memory_space<vmem>>, %arg4: memref<3x1x128xf32, #tpu.memory_space<vmem>>, %arg5: memref<3x128x256xbf16, #tpu.memory_space<vmem>>, %arg6: memref<3x1x128xf32, #tpu.memory_space<vmem>>, %arg7: memref<32x128xf32, #tpu.memory_space<vmem>>, %arg8: memref<3x64x128xbf16, #tpu.memory_space<vmem>>) attributes {dimension_semantics = [], scalar_prefetch = 0 : i64, scratch_operands = 0 : i64, tpu.core_type = #tpu.core_type<tc>} {
    %c0 = arith.constant 0 : index
    %c0_0 = arith.constant 0 : index
    %0 = vector.load %arg0[%c0, %c0_0] : memref<32x128xf32, #tpu.memory_space<vmem>>, vector<32x128xf32>
    %c0_1 = arith.constant 0 : index
    %c0_2 = arith.constant 0 : index
    %1 = vector.load %arg1[%c0_1, %c0_2] : memref<32x2xf32, #tpu.memory_space<vmem>>, vector<32x2xf32>
    %c0_3 = arith.constant 0 : index
    %c0_4 = arith.constant 0 : index
    %2 = vector.load %arg2[%c0_3, %c0_4] : memref<2x1xf32, #tpu.memory_space<vmem>>, vector<2x1xf32>
    %3 = arith.mulf %0, %0 : vector<32x128xf32>
    %4 = tpu.concatenate %0, %3 in 1 : vector<32x128xf32>, vector<32x128xf32> -> vector<32x256xf32>
    %cst = arith.constant dense<0.000000e+00> : vector<2x256xf32>
    %5 = tpu.matmul %1, %4, %cst {dimension_numbers = #tpu.dot_dimension_numbers<[0], [0], [1], [1], [0, 1, 1, 1], [], []>} : vector<32x2xf32>, vector<32x256xf32>, vector<2x256xf32> -> vector<2x256xf32>
    %6 = vector.extract_strided_slice %5 {offsets = [0, 0], sizes = [2, 128], strides = [1, 1]} : vector<2x256xf32> to vector<2x128xf32>
    %7 = vector.broadcast %2 : vector<2x1xf32> to vector<2x128xf32>
    %8 = arith.mulf %6, %7 : vector<2x128xf32>
    %cst_5 = arith.constant dense<0.000000e+00> : vector<2xf32>
    %9 = vector.multi_reduction <add>, %8, %cst_5 [1] : vector<2x128xf32> to vector<2xf32>
    %10 = vector.shape_cast %9 : vector<2xf32> to vector<2x1xf32>
    %cst_6 = arith.constant 1.280000e+02 : f32
    %11 = vector.broadcast %cst_6 : f32 to vector<2x1xf32>
    %12 = arith.divf %10, %11 : vector<2x1xf32>
    %13 = vector.extract_strided_slice %5 {offsets = [0, 128], sizes = [2, 128], strides = [1, 1]} : vector<2x256xf32> to vector<2x128xf32>
    %14 = vector.broadcast %2 : vector<2x1xf32> to vector<2x128xf32>
    %15 = arith.mulf %13, %14 : vector<2x128xf32>
    %cst_7 = arith.constant dense<0.000000e+00> : vector<2xf32>
    %16 = vector.multi_reduction <add>, %15, %cst_7 [1] : vector<2x128xf32> to vector<2xf32>
    %17 = vector.shape_cast %16 : vector<2xf32> to vector<2x1xf32>
    %cst_8 = arith.constant 1.280000e+02 : f32
    %18 = vector.broadcast %cst_8 : f32 to vector<2x1xf32>
    %19 = arith.divf %17, %18 : vector<2x1xf32>
    %20 = arith.mulf %12, %12 : vector<2x1xf32>
    %21 = arith.subf %19, %20 : vector<2x1xf32>
    %cst_9 = arith.constant 9.99999997E-7 : f32
    %22 = vector.broadcast %cst_9 : f32 to vector<2x1xf32>
    %23 = arith.maximumf %21, %22 : vector<2x1xf32>
    %24 = math.rsqrt %23 : vector<2x1xf32>
    %25 = tpu.concatenate %12, %24 in 1 : vector<2x1xf32>, vector<2x1xf32> -> vector<2x2xf32>
    %cst_10 = arith.constant dense<0.000000e+00> : vector<32x2xf32>
    %26 = tpu.matmul %1, %25, %cst_10 {dimension_numbers = #tpu.dot_dimension_numbers<[1], [0], [0], [1], [0, 0, 1, 1], [], []>} : vector<32x2xf32>, vector<2x2xf32>, vector<32x2xf32> -> vector<32x2xf32>
    %27 = vector.extract_strided_slice %26 {offsets = [0, 0], sizes = [32, 1], strides = [1, 1]} : vector<32x2xf32> to vector<32x1xf32>
    %28 = vector.broadcast %27 : vector<32x1xf32> to vector<32x128xf32>
    %29 = arith.subf %0, %28 : vector<32x128xf32>
    %30 = vector.extract_strided_slice %26 {offsets = [0, 1], sizes = [32, 1], strides = [1, 1]} : vector<32x2xf32> to vector<32x1xf32>
    %31 = vector.broadcast %30 : vector<32x1xf32> to vector<32x128xf32>
    %32 = arith.mulf %29, %31 : vector<32x128xf32>
    %c0_11 = arith.constant 0 : index
    %c0_12 = arith.constant 0 : index
    %c0_13 = arith.constant 0 : index
    %33 = vector.load %arg3[%c0_11, %c0_12, %c0_13] : memref<3x1x128xf32, #tpu.memory_space<vmem>>, vector<1x1x128xf32>
    %34 = vector.shape_cast %33 : vector<1x1x128xf32> to vector<1x128xf32>
    %35 = vector.broadcast %34 : vector<1x128xf32> to vector<32x128xf32>
    %36 = arith.mulf %32, %35 : vector<32x128xf32>
    %c0_14 = arith.constant 0 : index
    %c0_15 = arith.constant 0 : index
    %c0_16 = arith.constant 0 : index
    %37 = vector.load %arg4[%c0_14, %c0_15, %c0_16] : memref<3x1x128xf32, #tpu.memory_space<vmem>>, vector<1x1x128xf32>
    %38 = vector.shape_cast %37 : vector<1x1x128xf32> to vector<1x128xf32>
    %39 = vector.broadcast %38 : vector<1x128xf32> to vector<32x128xf32>
    %40 = arith.addf %36, %39 : vector<32x128xf32>
    %41 = arith.truncf %40 : vector<32x128xf32> to vector<32x128xbf16>
    %c0_17 = arith.constant 0 : index
    %c0_18 = arith.constant 0 : index
    %c0_19 = arith.constant 0 : index
    %42 = vector.load %arg5[%c0_17, %c0_18, %c0_19] : memref<3x128x256xbf16, #tpu.memory_space<vmem>>, vector<1x128x256xbf16>
    %43 = vector.shape_cast %42 : vector<1x128x256xbf16> to vector<128x256xbf16>
    %cst_20 = arith.constant dense<0.000000e+00> : vector<32x256xf32>
    %44 = tpu.matmul %41, %43, %cst_20 {dimension_numbers = #tpu.dot_dimension_numbers<[1], [0], [0], [1], [0, 0, 1, 1], [], []>} : vector<32x128xbf16>, vector<128x256xbf16>, vector<32x256xf32> -> vector<32x256xf32>
    %45 = vector.extract_strided_slice %44 {offsets = [0, 0], sizes = [32, 128], strides = [1, 1]} : vector<32x256xf32> to vector<32x128xf32>
    %c0_21 = arith.constant 0 : index
    %c0_22 = arith.constant 0 : index
    %c0_23 = arith.constant 0 : index
    %46 = vector.load %arg6[%c0_21, %c0_22, %c0_23] : memref<3x1x128xf32, #tpu.memory_space<vmem>>, vector<1x1x128xf32>
    %47 = vector.shape_cast %46 : vector<1x1x128xf32> to vector<1x128xf32>
    %48 = vector.broadcast %47 : vector<1x128xf32> to vector<32x128xf32>
    %49 = arith.addf %45, %48 : vector<32x128xf32>
    %50 = arith.truncf %49 : vector<32x128xf32> to vector<32x128xbf16>
    %c0_24 = arith.constant 0 : index
    %c0_25 = arith.constant 0 : index
    %c0_26 = arith.constant 0 : index
    %51 = vector.load %arg8[%c0_24, %c0_25, %c0_26] : memref<3x64x128xbf16, #tpu.memory_space<vmem>>, vector<1x32x128xbf16>
    %52 = vector.shape_cast %51 : vector<1x32x128xbf16> to vector<32x128xbf16>
    %53 = vector.shape_cast %50 : vector<32x128xbf16> to vector<1x32x128xbf16>
    tpu.vector_store %arg8[%c0_24, %c0_25, %c0_26], %53 {strides = array<i32>} : memref<3x64x128xbf16, #tpu.memory_space<vmem>>, vector<1x32x128xbf16>,
    %54 = vector.extract_strided_slice %44 {offsets = [0, 128], sizes = [32, 128], strides = [1, 1]} : vector<32x256xf32> to vector<32x128xf32>
    %55 = arith.truncf %54 : vector<32x128xf32> to vector<32x128xbf16>
    %c0_27 = arith.constant 0 : index
    %c32 = arith.constant 32 : index
    %c0_28 = arith.constant 0 : index
    %56 = vector.load %arg8[%c0_27, %c32, %c0_28] : memref<3x64x128xbf16, #tpu.memory_space<vmem>>, vector<1x32x128xbf16>
    %57 = vector.shape_cast %56 : vector<1x32x128xbf16> to vector<32x128xbf16>
    %58 = vector.shape_cast %55 : vector<32x128xbf16> to vector<1x32x128xbf16>
    tpu.vector_store %arg8[%c0_27, %c32, %c0_28], %58 {strides = array<i32>} : memref<3x64x128xbf16, #tpu.memory_space<vmem>>, vector<1x32x128xbf16>,
    %59 = arith.mulf %40, %40 : vector<32x128xf32>
    %60 = tpu.concatenate %40, %59 in 1 : vector<32x128xf32>, vector<32x128xf32> -> vector<32x256xf32>
    %cst_29 = arith.constant dense<0.000000e+00> : vector<2x256xf32>
    %61 = tpu.matmul %1, %60, %cst_29 {dimension_numbers = #tpu.dot_dimension_numbers<[0], [0], [1], [1], [0, 1, 1, 1], [], []>} : vector<32x2xf32>, vector<32x256xf32>, vector<2x256xf32> -> vector<2x256xf32>
    %62 = vector.extract_strided_slice %61 {offsets = [0, 0], sizes = [2, 128], strides = [1, 1]} : vector<2x256xf32> to vector<2x128xf32>
    %63 = vector.broadcast %2 : vector<2x1xf32> to vector<2x128xf32>
    %64 = arith.mulf %62, %63 : vector<2x128xf32>
    %cst_30 = arith.constant dense<0.000000e+00> : vector<2xf32>
    %65 = vector.multi_reduction <add>, %64, %cst_30 [1] : vector<2x128xf32> to vector<2xf32>
    %66 = vector.shape_cast %65 : vector<2xf32> to vector<2x1xf32>
    %cst_31 = arith.constant 1.280000e+02 : f32
    %67 = vector.broadcast %cst_31 : f32 to vector<2x1xf32>
    %68 = arith.divf %66, %67 : vector<2x1xf32>
    %69 = vector.extract_strided_slice %61 {offsets = [0, 128], sizes = [2, 128], strides = [1, 1]} : vector<2x256xf32> to vector<2x128xf32>
    %70 = vector.broadcast %2 : vector<2x1xf32> to vector<2x128xf32>
    %71 = arith.mulf %69, %70 : vector<2x128xf32>
    %cst_32 = arith.constant dense<0.000000e+00> : vector<2xf32>
    %72 = vector.multi_reduction <add>, %71, %cst_32 [1] : vector<2x128xf32> to vector<2xf32>
    %73 = vector.shape_cast %72 : vector<2xf32> to vector<2x1xf32>
    %cst_33 = arith.constant 1.280000e+02 : f32
    %74 = vector.broadcast %cst_33 : f32 to vector<2x1xf32>
    %75 = arith.divf %73, %74 : vector<2x1xf32>
    %76 = arith.mulf %68, %68 : vector<2x1xf32>
    %77 = arith.subf %75, %76 : vector<2x1xf32>
    %cst_34 = arith.constant 9.99999997E-7 : f32
    %78 = vector.broadcast %cst_34 : f32 to vector<2x1xf32>
    %79 = arith.maximumf %77, %78 : vector<2x1xf32>
    %80 = math.rsqrt %79 : vector<2x1xf32>
    %81 = tpu.concatenate %68, %80 in 1 : vector<2x1xf32>, vector<2x1xf32> -> vector<2x2xf32>
    %cst_35 = arith.constant dense<0.000000e+00> : vector<32x2xf32>
    %82 = tpu.matmul %1, %81, %cst_35 {dimension_numbers = #tpu.dot_dimension_numbers<[1], [0], [0], [1], [0, 0, 1, 1], [], []>} : vector<32x2xf32>, vector<2x2xf32>, vector<32x2xf32> -> vector<32x2xf32>
    %83 = vector.extract_strided_slice %82 {offsets = [0, 0], sizes = [32, 1], strides = [1, 1]} : vector<32x2xf32> to vector<32x1xf32>
    %84 = vector.broadcast %83 : vector<32x1xf32> to vector<32x128xf32>
    %85 = arith.subf %40, %84 : vector<32x128xf32>
    %86 = vector.extract_strided_slice %82 {offsets = [0, 1], sizes = [32, 1], strides = [1, 1]} : vector<32x2xf32> to vector<32x1xf32>
    %87 = vector.broadcast %86 : vector<32x1xf32> to vector<32x128xf32>
    %88 = arith.mulf %85, %87 : vector<32x128xf32>
    %c1 = arith.constant 1 : index
    %c0_36 = arith.constant 0 : index
    %c0_37 = arith.constant 0 : index
    %89 = vector.load %arg3[%c1, %c0_36, %c0_37] : memref<3x1x128xf32, #tpu.memory_space<vmem>>, vector<1x1x128xf32>
    %90 = vector.shape_cast %89 : vector<1x1x128xf32> to vector<1x128xf32>
    %91 = vector.broadcast %90 : vector<1x128xf32> to vector<32x128xf32>
    %92 = arith.mulf %88, %91 : vector<32x128xf32>
    %c1_38 = arith.constant 1 : index
    %c0_39 = arith.constant 0 : index
    %c0_40 = arith.constant 0 : index
    %93 = vector.load %arg4[%c1_38, %c0_39, %c0_40] : memref<3x1x128xf32, #tpu.memory_space<vmem>>, vector<1x1x128xf32>
    %94 = vector.shape_cast %93 : vector<1x1x128xf32> to vector<1x128xf32>
    %95 = vector.broadcast %94 : vector<1x128xf32> to vector<32x128xf32>
    %96 = arith.addf %92, %95 : vector<32x128xf32>
    %97 = arith.truncf %96 : vector<32x128xf32> to vector<32x128xbf16>
    %c1_41 = arith.constant 1 : index
    %c0_42 = arith.constant 0 : index
    %c0_43 = arith.constant 0 : index
    %98 = vector.load %arg5[%c1_41, %c0_42, %c0_43] : memref<3x128x256xbf16, #tpu.memory_space<vmem>>, vector<1x128x256xbf16>
    %99 = vector.shape_cast %98 : vector<1x128x256xbf16> to vector<128x256xbf16>
    %cst_44 = arith.constant dense<0.000000e+00> : vector<32x256xf32>
    %100 = tpu.matmul %97, %99, %cst_44 {dimension_numbers = #tpu.dot_dimension_numbers<[1], [0], [0], [1], [0, 0, 1, 1], [], []>} : vector<32x128xbf16>, vector<128x256xbf16>, vector<32x256xf32> -> vector<32x256xf32>
    %101 = vector.extract_strided_slice %100 {offsets = [0, 0], sizes = [32, 128], strides = [1, 1]} : vector<32x256xf32> to vector<32x128xf32>
    %c1_45 = arith.constant 1 : index
    %c0_46 = arith.constant 0 : index
    %c0_47 = arith.constant 0 : index
    %102 = vector.load %arg6[%c1_45, %c0_46, %c0_47] : memref<3x1x128xf32, #tpu.memory_space<vmem>>, vector<1x1x128xf32>
    %103 = vector.shape_cast %102 : vector<1x1x128xf32> to vector<1x128xf32>
    %104 = vector.broadcast %103 : vector<1x128xf32> to vector<32x128xf32>
    %105 = arith.addf %101, %104 : vector<32x128xf32>
    %106 = arith.truncf %105 : vector<32x128xf32> to vector<32x128xbf16>
    %c1_48 = arith.constant 1 : index
    %c0_49 = arith.constant 0 : index
    %c0_50 = arith.constant 0 : index
    %107 = vector.load %arg8[%c1_48, %c0_49, %c0_50] : memref<3x64x128xbf16, #tpu.memory_space<vmem>>, vector<1x32x128xbf16>
    %108 = vector.shape_cast %107 : vector<1x32x128xbf16> to vector<32x128xbf16>
    %109 = vector.shape_cast %106 : vector<32x128xbf16> to vector<1x32x128xbf16>
    tpu.vector_store %arg8[%c1_48, %c0_49, %c0_50], %109 {strides = array<i32>} : memref<3x64x128xbf16, #tpu.memory_space<vmem>>, vector<1x32x128xbf16>,
    %110 = vector.extract_strided_slice %100 {offsets = [0, 128], sizes = [32, 128], strides = [1, 1]} : vector<32x256xf32> to vector<32x128xf32>
    %111 = arith.truncf %110 : vector<32x128xf32> to vector<32x128xbf16>
    %c1_51 = arith.constant 1 : index
    %c32_52 = arith.constant 32 : index
    %c0_53 = arith.constant 0 : index
    %112 = vector.load %arg8[%c1_51, %c32_52, %c0_53] : memref<3x64x128xbf16, #tpu.memory_space<vmem>>, vector<1x32x128xbf16>
    %113 = vector.shape_cast %112 : vector<1x32x128xbf16> to vector<32x128xbf16>
    %114 = vector.shape_cast %111 : vector<32x128xbf16> to vector<1x32x128xbf16>
    tpu.vector_store %arg8[%c1_51, %c32_52, %c0_53], %114 {strides = array<i32>} : memref<3x64x128xbf16, #tpu.memory_space<vmem>>, vector<1x32x128xbf16>,
    %115 = arith.mulf %96, %96 : vector<32x128xf32>
    %116 = tpu.concatenate %96, %115 in 1 : vector<32x128xf32>, vector<32x128xf32> -> vector<32x256xf32>
    %cst_54 = arith.constant dense<0.000000e+00> : vector<2x256xf32>
    %117 = tpu.matmul %1, %116, %cst_54 {dimension_numbers = #tpu.dot_dimension_numbers<[0], [0], [1], [1], [0, 1, 1, 1], [], []>} : vector<32x2xf32>, vector<32x256xf32>, vector<2x256xf32> -> vector<2x256xf32>
    %118 = vector.extract_strided_slice %117 {offsets = [0, 0], sizes = [2, 128], strides = [1, 1]} : vector<2x256xf32> to vector<2x128xf32>
    %119 = vector.broadcast %2 : vector<2x1xf32> to vector<2x128xf32>
    %120 = arith.mulf %118, %119 : vector<2x128xf32>
    %cst_55 = arith.constant dense<0.000000e+00> : vector<2xf32>
    %121 = vector.multi_reduction <add>, %120, %cst_55 [1] : vector<2x128xf32> to vector<2xf32>
    %122 = vector.shape_cast %121 : vector<2xf32> to vector<2x1xf32>
    %cst_56 = arith.constant 1.280000e+02 : f32
    %123 = vector.broadcast %cst_56 : f32 to vector<2x1xf32>
    %124 = arith.divf %122, %123 : vector<2x1xf32>
    %125 = vector.extract_strided_slice %117 {offsets = [0, 128], sizes = [2, 128], strides = [1, 1]} : vector<2x256xf32> to vector<2x128xf32>
    %126 = vector.broadcast %2 : vector<2x1xf32> to vector<2x128xf32>
    %127 = arith.mulf %125, %126 : vector<2x128xf32>
    %cst_57 = arith.constant dense<0.000000e+00> : vector<2xf32>
    %128 = vector.multi_reduction <add>, %127, %cst_57 [1] : vector<2x128xf32> to vector<2xf32>
    %129 = vector.shape_cast %128 : vector<2xf32> to vector<2x1xf32>
    %cst_58 = arith.constant 1.280000e+02 : f32
    %130 = vector.broadcast %cst_58 : f32 to vector<2x1xf32>
    %131 = arith.divf %129, %130 : vector<2x1xf32>
    %132 = arith.mulf %124, %124 : vector<2x1xf32>
    %133 = arith.subf %131, %132 : vector<2x1xf32>
    %cst_59 = arith.constant 9.99999997E-7 : f32
    %134 = vector.broadcast %cst_59 : f32 to vector<2x1xf32>
    %135 = arith.maximumf %133, %134 : vector<2x1xf32>
    %136 = math.rsqrt %135 : vector<2x1xf32>
    %137 = tpu.concatenate %124, %136 in 1 : vector<2x1xf32>, vector<2x1xf32> -> vector<2x2xf32>
    %cst_60 = arith.constant dense<0.000000e+00> : vector<32x2xf32>
    %138 = tpu.matmul %1, %137, %cst_60 {dimension_numbers = #tpu.dot_dimension_numbers<[1], [0], [0], [1], [0, 0, 1, 1], [], []>} : vector<32x2xf32>, vector<2x2xf32>, vector<32x2xf32> -> vector<32x2xf32>
    %139 = vector.extract_strided_slice %138 {offsets = [0, 0], sizes = [32, 1], strides = [1, 1]} : vector<32x2xf32> to vector<32x1xf32>
    %140 = vector.broadcast %139 : vector<32x1xf32> to vector<32x128xf32>
    %141 = arith.subf %96, %140 : vector<32x128xf32>
    %142 = vector.extract_strided_slice %138 {offsets = [0, 1], sizes = [32, 1], strides = [1, 1]} : vector<32x2xf32> to vector<32x1xf32>
    %143 = vector.broadcast %142 : vector<32x1xf32> to vector<32x128xf32>
    %144 = arith.mulf %141, %143 : vector<32x128xf32>
    %c2 = arith.constant 2 : index
    %c0_61 = arith.constant 0 : index
    %c0_62 = arith.constant 0 : index
    %145 = vector.load %arg3[%c2, %c0_61, %c0_62] : memref<3x1x128xf32, #tpu.memory_space<vmem>>, vector<1x1x128xf32>
    %146 = vector.shape_cast %145 : vector<1x1x128xf32> to vector<1x128xf32>
    %147 = vector.broadcast %146 : vector<1x128xf32> to vector<32x128xf32>
    %148 = arith.mulf %144, %147 : vector<32x128xf32>
    %c2_63 = arith.constant 2 : index
    %c0_64 = arith.constant 0 : index
    %c0_65 = arith.constant 0 : index
    %149 = vector.load %arg4[%c2_63, %c0_64, %c0_65] : memref<3x1x128xf32, #tpu.memory_space<vmem>>, vector<1x1x128xf32>
    %150 = vector.shape_cast %149 : vector<1x1x128xf32> to vector<1x128xf32>
    %151 = vector.broadcast %150 : vector<1x128xf32> to vector<32x128xf32>
    %152 = arith.addf %148, %151 : vector<32x128xf32>
    %153 = arith.truncf %152 : vector<32x128xf32> to vector<32x128xbf16>
    %c2_66 = arith.constant 2 : index
    %c0_67 = arith.constant 0 : index
    %c0_68 = arith.constant 0 : index
    %154 = vector.load %arg5[%c2_66, %c0_67, %c0_68] : memref<3x128x256xbf16, #tpu.memory_space<vmem>>, vector<1x128x256xbf16>
    %155 = vector.shape_cast %154 : vector<1x128x256xbf16> to vector<128x256xbf16>
    %cst_69 = arith.constant dense<0.000000e+00> : vector<32x256xf32>
    %156 = tpu.matmul %153, %155, %cst_69 {dimension_numbers = #tpu.dot_dimension_numbers<[1], [0], [0], [1], [0, 0, 1, 1], [], []>} : vector<32x128xbf16>, vector<128x256xbf16>, vector<32x256xf32> -> vector<32x256xf32>
    %157 = vector.extract_strided_slice %156 {offsets = [0, 0], sizes = [32, 128], strides = [1, 1]} : vector<32x256xf32> to vector<32x128xf32>
    %c2_70 = arith.constant 2 : index
    %c0_71 = arith.constant 0 : index
    %c0_72 = arith.constant 0 : index
    %158 = vector.load %arg6[%c2_70, %c0_71, %c0_72] : memref<3x1x128xf32, #tpu.memory_space<vmem>>, vector<1x1x128xf32>
    %159 = vector.shape_cast %158 : vector<1x1x128xf32> to vector<1x128xf32>
    %160 = vector.broadcast %159 : vector<1x128xf32> to vector<32x128xf32>
    %161 = arith.addf %157, %160 : vector<32x128xf32>
    %162 = arith.truncf %161 : vector<32x128xf32> to vector<32x128xbf16>
    %c2_73 = arith.constant 2 : index
    %c0_74 = arith.constant 0 : index
    %c0_75 = arith.constant 0 : index
    %163 = vector.load %arg8[%c2_73, %c0_74, %c0_75] : memref<3x64x128xbf16, #tpu.memory_space<vmem>>, vector<1x32x128xbf16>
    %164 = vector.shape_cast %163 : vector<1x32x128xbf16> to vector<32x128xbf16>
    %165 = vector.shape_cast %162 : vector<32x128xbf16> to vector<1x32x128xbf16>
    tpu.vector_store %arg8[%c2_73, %c0_74, %c0_75], %165 {strides = array<i32>} : memref<3x64x128xbf16, #tpu.memory_space<vmem>>, vector<1x32x128xbf16>,
    %166 = vector.extract_strided_slice %156 {offsets = [0, 128], sizes = [32, 128], strides = [1, 1]} : vector<32x256xf32> to vector<32x128xf32>
    %167 = arith.truncf %166 : vector<32x128xf32> to vector<32x128xbf16>
    %c2_76 = arith.constant 2 : index
    %c32_77 = arith.constant 32 : index
    %c0_78 = arith.constant 0 : index
    %168 = vector.load %arg8[%c2_76, %c32_77, %c0_78] : memref<3x64x128xbf16, #tpu.memory_space<vmem>>, vector<1x32x128xbf16>
    %169 = vector.shape_cast %168 : vector<1x32x128xbf16> to vector<32x128xbf16>
    %170 = vector.shape_cast %167 : vector<32x128xbf16> to vector<1x32x128xbf16>
    tpu.vector_store %arg8[%c2_76, %c32_77, %c0_78], %170 {strides = array<i32>} : memref<3x64x128xbf16, #tpu.memory_space<vmem>>, vector<1x32x128xbf16>,
    %c0_79 = arith.constant 0 : index
    %c0_80 = arith.constant 0 : index
    %171 = vector.load %arg7[%c0_79, %c0_80] : memref<32x128xf32, #tpu.memory_space<vmem>>, vector<32x128xf32>
    tpu.vector_store %arg7[%c0_79, %c0_80], %152 {strides = array<i32>} : memref<32x128xf32, #tpu.memory_space<vmem>>, vector<32x128xf32>,
    return
  }
}

</mosaic_0001>

<llo_original>
// kernel: tpu_custom_call.1
$region0: #{tpu_custom_call.1}
  #allocation0 [shape = 'u32[]', space=smem, size = 0x4, offset = 0x4, fixed_abs, tag = 'smem constant byte address 0x4 - core index']
  #allocation1 [shape = 'u32[144,128]{1,0:T(1,128)}', space=vmem, size = 0x12000, scoped, tag = 'internal scratch']
  %s0 = inlined_call_operand.vmem [shape: f32[32,128], index: 0, kind: input, shape index: {}]
  %s1 = inlined_call_operand.vmem [shape: f32[32,2], index: 1, kind: input, shape index: {}]
  %s2 = inlined_call_operand.vmem [shape: f32[2,1], index: 2, kind: input, shape index: {}]
  %s3 = inlined_call_operand.vmem [shape: f32[3,1,128], index: 3, kind: input, shape index: {}]
  %s4 = inlined_call_operand.vmem [shape: f32[3,1,128], index: 4, kind: input, shape index: {}]
  %s5 = inlined_call_operand.hbm [shape: bf16[3,128,256], index: 5, kind: input, shape index: {}]
  %s6 = inlined_call_operand.vmem [shape: f32[3,1,128], index: 6, kind: input, shape index: {}]
  %s7 = inlined_call_operand.hbm [shape: f32[32,128], index: 7, kind: output, shape index: {0}]
  %s8 = inlined_call_operand.hbm [shape: bf16[3,64,128], index: 8, kind: output, shape index: {1}]
  %9 = xla_tuple %s7, %s8
  %s10 = sld [smem:[#allocation0]]
  $region50: #{tpu_custom_call.1} parent=0
    _
  %s12 = ssub.s32 1, %s10
  %s13 = scalar_select 0, %s12, %s10
  $region1: #{tpu_custom_call.1} parent=0
    #allocation2 [shape = 'u8[196608]{0}', space=vmem, size = 0x30000, scoped, tag = 'input window, operand 5, single buffered']
    #allocation3 [shape = 's32[1]{0}', space=sflag, size = 0x4, scoped, tag = 'scoped memory for tpu_custom_call.1']
    #allocation4 [shape = 's32[1]{0}', space=sflag, size = 0x4, scoped, tag = 'scoped memory for tpu_custom_call.1']
    #allocation5 [shape = 'u8[16384]{0}', space=vmem, size = 0x4000, scoped, tag = 'output window, operand 0, single buffered']
    #allocation6 [shape = 'u8[49152]{0}', space=vmem, size = 0xc000, scoped, tag = 'output window, operand 1, single buffered']
    #allocation7 [shape = 's32[1]{0}', space=sflag, size = 0x4, scoped, tag = 'scoped memory for tpu_custom_call.1']
    %14 = vsyncpa [#allocation3], 0
    %15 = vsyncpa [#allocation4], 0
    %16 = vsyncpa [#allocation7], 0
    // Predicated region
    $region2: #{tpu_custom_call.1} parent=1 // pred_check
      _
    $region3: #{tpu_custom_call.1} parent=1 // pred_check_branch
      %18 = sbr.rel (0) target = $region5
    $region4: #{tpu_custom_call.1} parent=1 // pred_region
      _
    $region5: #{tpu_custom_call.1} parent=1 // pred_fallthru
      _
    // Predicated region
    $region6: #{tpu_custom_call.1} parent=1 // pred_check
      _
    $region7: #{tpu_custom_call.1} parent=1 // pred_check_branch
      %20 = sbr.rel (0) target = $region9
    $region8: #{tpu_custom_call.1} parent=1 // pred_region
      _
    $region9: #{tpu_custom_call.1} parent=1 // pred_fallthru
      _
    // Predicated region
    $region10: #{tpu_custom_call.1} parent=1 // pred_check
      _
    $region11: #{tpu_custom_call.1} parent=1 // pred_check_branch
      %22 = sbr.rel (0) target = $region13
    $region12: #{tpu_custom_call.1} parent=1 // pred_region
      _
    $region13: #{tpu_custom_call.1} parent=1 // pred_fallthru
      _
    // Predicated region
    $region14: #{tpu_custom_call.1} parent=1 // pred_check
      _
    $region15: #{tpu_custom_call.1} parent=1 // pred_check_branch
      %24 = sbr.rel (0) target = $region17
    $region16: #{tpu_custom_call.1} parent=1 // pred_region
      _
    $region17: #{tpu_custom_call.1} parent=1 // pred_fallthru
      _
    // Predicated region
    $region18: #{tpu_custom_call.1} parent=1 // pred_check
      _
    $region19: #{tpu_custom_call.1} parent=1 // pred_check_branch
      %26 = sbr.rel (0) target = $region21
    $region20: #{tpu_custom_call.1} parent=1 // pred_region
      _
    $region21: #{tpu_custom_call.1} parent=1 // pred_fallthru
      _
    // Predicated region
    $region22: #{tpu_custom_call.1} parent=1 // pred_check
      _
    $region23: #{tpu_custom_call.1} parent=1 // pred_check_branch
      %28 = sbr.rel (0) target = $region25
    $region24: #{tpu_custom_call.1} parent=1 // pred_region
      %s30 = ssub.s32 6144, 6144
      %31 = vsyncadd [#allocation3], %s30
      %s32 = sshll.u32 [#allocation2], 4
      %s33 = int_to_ptr.vmem [resolvable:$true] %s32
      %38 = dma.hbm_to_vmem [thread:$0]  %s5, 6144, %s33, [#allocation3], 128, 128, 8
    $region25: #{tpu_custom_call.1} parent=1 // pred_fallthru
      _
    // Predicated region
    $region26: #{tpu_custom_call.1} parent=1 // pred_check
      _
    $region27: #{tpu_custom_call.1} parent=1 // pred_check_branch
      %40 = sbr.rel (0) target = $region29
    $region28: #{tpu_custom_call.1} parent=1 // pred_region
      _
    $region29: #{tpu_custom_call.1} parent=1 // pred_fallthru
      _
    // Predicated region
    $region30: #{tpu_custom_call.1} parent=1 // pred_check
      _
    $region31: #{tpu_custom_call.1} parent=1 // pred_check_branch
      %42 = sbr.rel (0) target = $region33
    $region32: #{tpu_custom_call.1} parent=1 // pred_region
      %43 = dma.done [#allocation3], 6144
    $region33: #{tpu_custom_call.1} parent=1 // pred_fallthru
      _
    %v45 = vld [vmem:[%s0] sm:$0xff]
    %v46 = vld [vmem:[%s0 + $0x8] sm:$0xff]
    %v47 = vld [vmem:[%s0 + $0x10] sm:$0xff]
    %v48 = vld [vmem:[%s0 + $0x18] sm:$0xff]
    %v49 = vld [vmem:[%s1] sm:$0xff]
    %v50 = vld [vmem:[%s1 + $0x8] sm:$0xff]
    %v51 = vld [vmem:[%s1 + $0x10] sm:$0xff]
    %v52 = vld [vmem:[%s1 + $0x18] sm:$0xff]
    %v53 = vld [vmem:[%s2] sm:$0x3]
    %v54 = vmul.f32 %v45, %v45
    %v55 = vmul.f32 %v46, %v46
    %v56 = vmul.f32 %v47, %v47
    %v57 = vmul.f32 %v48, %v48
    %58 = vxpose.xlu0.b32.start [1/16] %v49, 128
    %59 = vxpose.xlu0.b32.cont [2/16] %v50, 128
    %60 = vxpose.xlu0.b32.cont [3/16] %v51, 128
    %61 = vxpose.xlu0.b32.cont [4/16] %v52, 128
    %62 = vxpose.xlu0.b32.cont [5/16] 0.0, 128
    %63 = vxpose.xlu0.b32.cont [6/16] 0.0, 128
    %64 = vxpose.xlu0.b32.cont [7/16] 0.0, 128
    %65 = vxpose.xlu0.b32.cont [8/16] 0.0, 128
    %66 = vxpose.xlu0.b32.cont [9/16] 0.0, 128
    %67 = vxpose.xlu0.b32.cont [10/16] 0.0, 128
    %68 = vxpose.xlu0.b32.cont [11/16] 0.0, 128
    %69 = vxpose.xlu0.b32.cont [12/16] 0.0, 128
    %70 = vxpose.xlu0.b32.cont [13/16] 0.0, 128
    %71 = vxpose.xlu0.b32.cont [14/16] 0.0, 128
    %72 = vxpose.xlu0.b32.cont [15/16] 0.0, 128
    %73 = vxpose.xlu0.b32.end [16/16] 0.0, 128
    %v74 = vpop.trf.xlu0
    %v75 = vpop.trf.xlu0
    %v76 = vpop.trf.xlu0
    %v77 = vpop.trf.xlu0
    %v78 = vpop.trf.xlu0
    %v79 = vpop.trf.xlu0
    %v80 = vpop.trf.xlu0
    %v81 = vpop.trf.xlu0
    %v82 = vpop.trf.xlu0
    %v83 = vpop.trf.xlu0
    %v84 = vpop.trf.xlu0
    %v85 = vpop.trf.xlu0
    %v86 = vpop.trf.xlu0
    %v87 = vpop.trf.xlu0
    %v88 = vpop.trf.xlu0
    %v89 = vpop.trf.xlu0
    %vm90 = vcmask 261120
    %v92 = vsel %vm90, %v74, 0
    %94 = vmatprep.subr.mxu0 0.0
    %95 = vmatpush1.msra.mxu0 0.0
    %96 = vmatprep.subr.mxu0 0.0
    %97 = vmatpush1.msra.mxu0 0.0
    %98 = vmatprep.subr.mxu0 0.0
    %99 = vmatpush1.msra.mxu0 0.0
    %100 = vmatprep.subr.mxu0 0.0
    %101 = vmatpush1.msra.mxu0 0.0
    %102 = vmatprep.subr.mxu0 0.0
    %103 = vmatpush1.msra.mxu0 0.0
    %104 = vmatprep.subr.mxu0 0.0
    %105 = vmatpush1.msra.mxu0 0.0
    %106 = vmatprep.subr.mxu0 0.0
    %107 = vmatpush1.msra.mxu0 0.0
    %108 = vmatprep.subr.mxu0 0.0
    %109 = vmatpush1.msra.mxu0 0.0
    %110 = vmatprep.subr.mxu0 0.0
    %111 = vmatpush1.msra.mxu0 0.0
    %112 = vmatprep.subr.mxu0 0.0
    %113 = vmatpush1.msra.mxu0 0.0
    %114 = vmatprep.subr.mxu0 0.0
    %115 = vmatpush1.msra.mxu0 0.0
    %116 = vmatprep.subr.mxu0 0.0
    %117 = vmatpush1.msra.mxu0 0.0
    %118 = vmatprep.subr.mxu0 %v57
    %119 = vmatpush1.msra.mxu0 %v48
    %120 = vmatprep.subr.mxu0 %v56
    %121 = vmatpush1.msra.mxu0 %v47
    %122 = vmatprep.subr.mxu0 %v55
    %123 = vmatpush1.msra.mxu0 %v46
    %124 = vmatprep.subr.mxu0 %v54
    %125 = vmatpush1.msra.mxu0 %v45
    %126 = vmatprep.subr.mxu0 0.0
    %127 = vmatpush2.msra.mxu0 0.0
    %128 = vmatprep.subr.mxu0 0.0
    %129 = vmatpush2.msra.mxu0 0.0
    %130 = vmatprep.subr.mxu0 0.0
    %131 = vmatpush2.msra.mxu0 0.0
    %132 = vmatprep.subr.mxu0 0.0
    %133 = vmatpush2.msra.mxu0 0.0
    %134 = vmatprep.subr.mxu0 0.0
    %135 = vmatpush2.msra.mxu0 0.0
    %136 = vmatprep.subr.mxu0 0.0
    %137 = vmatpush2.msra.mxu0 0.0
    %138 = vmatprep.subr.mxu0 0.0
    %139 = vmatpush2.msra.mxu0 0.0
    %140 = vmatprep.subr.mxu0 0.0
    %141 = vmatpush2.msra.mxu0 0.0
    %142 = vmatprep.subr.mxu0 0.0
    %143 = vmatpush2.msra.mxu0 0.0
    %144 = vmatprep.subr.mxu0 0.0
    %145 = vmatpush2.msra.mxu0 0.0
    %146 = vmatprep.subr.mxu0 0.0
    %147 = vmatpush2.msra.mxu0 0.0
    %148 = vmatprep.subr.mxu0 0.0
    %149 = vmatpush2.msra.mxu0 0.0
    %150 = vmatprep.subr.mxu0 0.0
    %151 = vmatpush2.msra.mxu0 0.0
    %152 = vmatprep.subr.mxu0 0.0
    %153 = vmatpush2.msra.mxu0 0.0
    %154 = vmatprep.subr.mxu0 0.0
    %155 = vmatpush2.msra.mxu0 0.0
    %156 = vmatprep.subr.mxu0 0.0
    %157 = vmatpush2.msra.mxu0 0.0
    %158 = vmatprep.mubr.f32.mxu0 0.0
    %159 = vmatmul.mubr.f32.gmra.mxu0 %v92
    %v160 = vpop.f32.mrf.mxu0
    %v161 = vadd.f32 0.0, %v160
    %v162 = vpop.f32.mrf.mxu0
    %v163 = vadd.f32 0.0, %v162
    %164 = vdwg.mxu0
    %166 = vset.pattern.permute.xlu0 0
    %167 = vperm.xlu0 %166, %v53
    %v168 = vpop.permute.xlu0 %167
    %v170 = vmul.f32 %v161, %v168
    %vm171 = vcmask 1041408
    %v172 = vsel %vm171, %v170, 0.0
    %173 = vadd.xlane.f32.xlu0 %v172
    %v174 = vpop.xlane.xlu0 %173
    %v175 = vrcp.pop 128.0
    %v176 = vmul.f32 %v174, %v175
    %v177 = vmul.f32 %v163, %v168
    %v178 = vsel %vm171, %v177, 0.0
    %179 = vadd.xlane.f32.xlu0 %v178
    %v180 = vpop.xlane.xlu0 %179
    %v181 = vmul.f32 %v180, %v175
    %v182 = vmul.f32 %v176, %v176
    %v183 = vsub.f32 %v181, %v182
    %v184 = vmax.f32 %v183, 1e-06
    %v185 = vrsqrt.pop %v184
    %vm186 = vcmask 7168
    %v187 = vsel %vm186, %v176, %v185
    %vm188 = vcmask 15360
    %v190 = vsel %vm188, %v49, 0
    %v193 = vsel %vm188, %v50, 0
    %v196 = vsel %vm188, %v51, 0
    %v199 = vsel %vm188, %v52, 0
    %v202 = vsel %vm171, %v187, 0
    %204 = vmatprep.subr.mxu0 0.0
    %205 = vmatpush1.msra.mxu0 0.0
    %206 = vmatprep.subr.mxu0 0.0
    %207 = vmatpush1.msra.mxu0 0.0
    %208 = vmatprep.subr.mxu0 0.0
    %209 = vmatpush1.msra.mxu0 0.0
    %210 = vmatprep.subr.mxu0 0.0
    %211 = vmatpush1.msra.mxu0 0.0
    %212 = vmatprep.subr.mxu0 0.0
    %213 = vmatpush1.msra.mxu0 0.0
    %214 = vmatprep.subr.mxu0 0.0
    %215 = vmatpush1.msra.mxu0 0.0
    %216 = vmatprep.subr.mxu0 0.0
    %217 = vmatpush1.msra.mxu0 0.0
    %218 = vmatprep.subr.mxu0 0.0
    %219 = vmatpush1.msra.mxu0 0.0
    %220 = vmatprep.subr.mxu0 0.0
    %221 = vmatpush1.msra.mxu0 0.0
    %222 = vmatprep.subr.mxu0 0.0
    %223 = vmatpush1.msra.mxu0 0.0
    %224 = vmatprep.subr.mxu0 0.0
    %225 = vmatpush1.msra.mxu0 0.0
    %226 = vmatprep.subr.mxu0 0.0
    %227 = vmatpush1.msra.mxu0 0.0
    %228 = vmatprep.subr.mxu0 0.0
    %229 = vmatpush1.msra.mxu0 0.0
    %230 = vmatprep.subr.mxu0 0.0
    %231 = vmatpush1.msra.mxu0 0.0
    %232 = vmatprep.subr.mxu0 0.0
    %233 = vmatpush1.msra.mxu0 0.0
    %234 = vmatprep.subr.mxu0 0.0
    %235 = vmatpush1.msra.mxu0 %v202
    %236 = vmatprep.subr.mxu0 0.0
    %237 = vmatpush2.msra.mxu0 0.0
    %238 = vmatprep.subr.mxu0 0.0
    %239 = vmatpush2.msra.mxu0 0.0
    %240 = vmatprep.subr.mxu0 0.0
    %241 = vmatpush2.msra.mxu0 0.0
    %242 = vmatprep.subr.mxu0 0.0
    %243 = vmatpush2.msra.mxu0 0.0
    %244 = vmatprep.subr.mxu0 0.0
    %245 = vmatpush2.msra.mxu0 0.0
    %246 = vmatprep.subr.mxu0 0.0
    %247 = vmatpush2.msra.mxu0 0.0
    %248 = vmatprep.subr.mxu0 0.0
    %249 = vmatpush2.msra.mxu0 0.0
    %250 = vmatprep.subr.mxu0 0.0
    %251 = vmatpush2.msra.mxu0 0.0
    %252 = vmatprep.subr.mxu0 0.0
    %253 = vmatpush2.msra.mxu0 0.0
    %254 = vmatprep.subr.mxu0 0.0
    %255 = vmatpush2.msra.mxu0 0.0
    %256 = vmatprep.subr.mxu0 0.0
    %257 = vmatpush2.msra.mxu0 0.0
    %258 = vmatprep.subr.mxu0 0.0
    %259 = vmatpush2.msra.mxu0 0.0
    %260 = vmatprep.subr.mxu0 0.0
    %261 = vmatpush2.msra.mxu0 0.0
    %262 = vmatprep.subr.mxu0 0.0
    %263 = vmatpush2.msra.mxu0 0.0
    %264 = vmatprep.subr.mxu0 0.0
    %265 = vmatpush2.msra.mxu0 0.0
    %266 = vmatprep.subr.mxu0 0.0
    %267 = vmatpush2.msra.mxu0 0.0
    %268 = vmatprep.mubr.f32.mxu0 0.0
    %269 = vmatmul.mubr.f32.gmra.mxu0 %v190
    %v270 = vpop.f32.mrf.mxu0
    %v271 = vadd.f32 0.0, %v270
    %v272 = vpop.f32.mrf.mxu0
    %273 = vmatprep.mubr.f32.mxu0 0.0
    %274 = vmatmul.mubr.f32.gmra.mxu0 %v193
    %v275 = vpop.f32.mrf.mxu0
    %v276 = vadd.f32 0.0, %v275
    %v277 = vpop.f32.mrf.mxu0
    %278 = vmatprep.mubr.f32.mxu0 0.0
    %279 = vmatmul.mubr.f32.gmra.mxu0 %v196
    %v280 = vpop.f32.mrf.mxu0
    %v281 = vadd.f32 0.0, %v280
    %v282 = vpop.f32.mrf.mxu0
    %283 = vmatprep.mubr.f32.mxu0 0.0
    %284 = vmatmul.mubr.f32.gmra.mxu0 %v199
    %v285 = vpop.f32.mrf.mxu0
    %v286 = vadd.f32 0.0, %v285
    %v287 = vpop.f32.mrf.mxu0
    %288 = vdwg.mxu0
    %290 = vset.pattern.permute.xlu0 0
    %291 = vperm.xlu0 %290, %v271
    %v292 = vpop.permute.xlu0 %291
    %295 = vset.pattern.permute.xlu0 0
    %296 = vperm.xlu0 %295, %v276
    %v297 = vpop.permute.xlu0 %296
    %300 = vset.pattern.permute.xlu0 0
    %301 = vperm.xlu0 %300, %v281
    %v302 = vpop.permute.xlu0 %301
    %305 = vset.pattern.permute.xlu0 0
    %306 = vperm.xlu0 %305, %v286
    %v307 = vpop.permute.xlu0 %306
    %v309 = vsub.f32 %v45, %v292
    %v310 = vsub.f32 %v46, %v297
    %v311 = vsub.f32 %v47, %v302
    %v312 = vsub.f32 %v48, %v307
    %313 = vset.pattern.permute.xlu0 1
    %314 = vperm.xlu0 %313, %v271
    %v315 = vpop.permute.xlu0 %314
    %317 = vset.pattern.permute.xlu0 1
    %318 = vperm.xlu0 %317, %v276
    %v319 = vpop.permute.xlu0 %318
    %321 = vset.pattern.permute.xlu0 1
    %322 = vperm.xlu0 %321, %v281
    %v323 = vpop.permute.xlu0 %322
    %325 = vset.pattern.permute.xlu0 1
    %326 = vperm.xlu0 %325, %v286
    %v327 = vpop.permute.xlu0 %326
    %v329 = vmul.f32 %v309, %v315
    %v330 = vmul.f32 %v310, %v319
    %v331 = vmul.f32 %v311, %v323
    %v332 = vmul.f32 %v312, %v327
    %v333 = vld [vmem:[%s3] sm:$0x1]
    %v335 = vlaneseq
    %v336 = vshrl.u32 %v335, 7
    %v337 = vsub.s32 0, %v336
    %v338 = vrot.slane %v333, %v337
    %v340 = vmul.f32 %v329, %v338
    %v341 = vmul.f32 %v330, %v338
    %v342 = vmul.f32 %v331, %v338
    %v343 = vmul.f32 %v332, %v338
    %v344 = vld [vmem:[%s4] sm:$0x1]
    %v346 = vlaneseq
    %v347 = vshrl.u32 %v346, 7
    %v348 = vsub.s32 0, %v347
    %v349 = vrot.slane %v344, %v348
    %v351 = vadd.f32 %v340, %v349
    %v352 = vadd.f32 %v341, %v349
    %v353 = vadd.f32 %v342, %v349
    %v354 = vadd.f32 %v343, %v349
    %v355 = vpack.c.bf16 %v352, %v351
    %v356 = vpack.c.bf16 %v354, %v353
    %v357 = vld [vmem:[#allocation2] sm:$0xff]
    %v358 = vld [vmem:[#allocation2 + $0x8] sm:$0xff]
    %v359 = vld [vmem:[#allocation2 + $0x10] sm:$0xff]
    %v360 = vld [vmem:[#allocation2 + $0x18] sm:$0xff]
    %v361 = vld [vmem:[#allocation2 + $0x20] sm:$0xff]
    %v362 = vld [vmem:[#allocation2 + $0x28] sm:$0xff]
    %v363 = vld [vmem:[#allocation2 + $0x30] sm:$0xff]
    %v364 = vld [vmem:[#allocation2 + $0x38] sm:$0xff]
    %v365 = vld [vmem:[#allocation2 + $0x40] sm:$0xff]
    %v366 = vld [vmem:[#allocation2 + $0x48] sm:$0xff]
    %v367 = vld [vmem:[#allocation2 + $0x50] sm:$0xff]
    %v368 = vld [vmem:[#allocation2 + $0x58] sm:$0xff]
    %v369 = vld [vmem:[#allocation2 + $0x60] sm:$0xff]
    %v370 = vld [vmem:[#allocation2 + $0x68] sm:$0xff]
    %v371 = vld [vmem:[#allocation2 + $0x70] sm:$0xff]
    %v372 = vld [vmem:[#allocation2 + $0x78] sm:$0xff]
    %v389 = vunpack.c.l.b16 %v357
    %v390 = vunpack.c.h.b16 %v357
    %v391 = vunpack.c.l.b16 %v358
    %v392 = vunpack.c.h.b16 %v358
    %v393 = vunpack.c.l.b16 %v359
    %v394 = vunpack.c.h.b16 %v359
    %v395 = vunpack.c.l.b16 %v360
    %v396 = vunpack.c.h.b16 %v360
    %v397 = vunpack.c.l.b16 %v361
    %v398 = vunpack.c.h.b16 %v361
    %v399 = vunpack.c.l.b16 %v362
    %v400 = vunpack.c.h.b16 %v362
    %v401 = vunpack.c.l.b16 %v363
    %v402 = vunpack.c.h.b16 %v363
    %v403 = vunpack.c.l.b16 %v364
    %v404 = vunpack.c.h.b16 %v364
    %v405 = vunpack.c.l.b16 %v365
    %v406 = vunpack.c.h.b16 %v365
    %v407 = vunpack.c.l.b16 %v366
    %v408 = vunpack.c.h.b16 %v366
    %v409 = vunpack.c.l.b16 %v367
    %v410 = vunpack.c.h.b16 %v367
    %v411 = vunpack.c.l.b16 %v368
    %v412 = vunpack.c.h.b16 %v368
    %v413 = vunpack.c.l.b16 %v369
    %v414 = vunpack.c.h.b16 %v369
    %v415 = vunpack.c.l.b16 %v370
    %v416 = vunpack.c.h.b16 %v370
    %v417 = vunpack.c.l.b16 %v371
    %v418 = vunpack.c.h.b16 %v371
    %v419 = vunpack.c.l.b16 %v372
    %v420 = vunpack.c.h.b16 %v372
    %v421 = vpack.c.b16 %v391, %v389
    %v422 = vpack.c.b16 %v392, %v390
    %v423 = vpack.c.b16 %v395, %v393
    %v424 = vpack.c.b16 %v396, %v394
    %v425 = vpack.c.b16 %v399, %v397
    %v426 = vpack.c.b16 %v400, %v398
    %v427 = vpack.c.b16 %v403, %v401
    %v428 = vpack.c.b16 %v404, %v402
    %v429 = vpack.c.b16 %v407, %v405
    %v430 = vpack.c.b16 %v408, %v406
    %v431 = vpack.c.b16 %v411, %v409
    %v432 = vpack.c.b16 %v412, %v410
    %v433 = vpack.c.b16 %v415, %v413
    %v434 = vpack.c.b16 %v416, %v414
    %v435 = vpack.c.b16 %v419, %v417
    %v436 = vpack.c.b16 %v420, %v418
    %453 = vmatprep.subr.bf16.mxu0 %v436
    %454 = vmatpush1.bf16.msra.mxu0 %v435
    %455 = vmatprep.subr.bf16.mxu0 %v434
    %456 = vmatpush1.bf16.msra.mxu0 %v433
    %457 = vmatprep.subr.bf16.mxu0 %v432
    %458 = vmatpush1.bf16.msra.mxu0 %v431
    %459 = vmatprep.subr.bf16.mxu0 %v430
    %460 = vmatpush1.bf16.msra.mxu0 %v429
    %461 = vmatprep.subr.bf16.mxu0 %v428
    %462 = vmatpush1.bf16.msra.mxu0 %v427
    %463 = vmatprep.subr.bf16.mxu0 %v426
    %464 = vmatpush1.bf16.msra.mxu0 %v425
    %465 = vmatprep.subr.bf16.mxu0 %v424
    %466 = vmatpush1.bf16.msra.mxu0 %v423
    %467 = vmatprep.subr.bf16.mxu0 %v422
    %468 = vmatpush1.bf16.msra.mxu0 %v421
    %469 = vmatprep.subr.bf16.mxu0 0
    %470 = vmatpush2.bf16.msra.mxu0 0
    %471 = vmatprep.subr.bf16.mxu0 0
    %472 = vmatpush2.bf16.msra.mxu0 0
    %473 = vmatprep.subr.bf16.mxu0 0
    %474 = vmatpush2.bf16.msra.mxu0 0
    %475 = vmatprep.subr.bf16.mxu0 0
    %476 = vmatpush2.bf16.msra.mxu0 0
    %477 = vmatprep.subr.bf16.mxu0 0
    %478 = vmatpush2.bf16.msra.mxu0 0
    %479 = vmatprep.subr.bf16.mxu0 0
    %480 = vmatpush2.bf16.msra.mxu0 0
    %481 = vmatprep.subr.bf16.mxu0 0
    %482 = vmatpush2.bf16.msra.mxu0 0
    %483 = vmatprep.subr.bf16.mxu0 0
    %484 = vmatpush2.bf16.msra.mxu0 0
    %485 = vmatprep.mubr.bf16.mxu0 0
    %486 = vmatmul.mubr.bf16.gmra.mxu0 %v355
    %v487 = vpop.f32.mrf.mxu0
    %v488 = vadd.f32 0.0, %v487
    %v489 = vpop.f32.mrf.mxu0
    %v490 = vadd.f32 0.0, %v489
    %v491 = vpop.f32.mrf.mxu0
    %v492 = vadd.f32 0.0, %v491
    %v493 = vpop.f32.mrf.mxu0
    %v494 = vadd.f32 0.0, %v493
    %495 = vmatprep.mubr.bf16.mxu0 0
    %496 = vmatmul.mubr.bf16.gmra.mxu0 %v356
    %v497 = vpop.f32.mrf.mxu0
    %v498 = vadd.f32 0.0, %v497
    %v499 = vpop.f32.mrf.mxu0
    %v500 = vadd.f32 0.0, %v499
    %v501 = vpop.f32.mrf.mxu0
    %v502 = vadd.f32 0.0, %v501
    %v503 = vpop.f32.mrf.mxu0
    %v504 = vadd.f32 0.0, %v503
    %505 = vdwg.mxu0
    %v506 = vld [vmem:[%s6] sm:$0x1]
    %v508 = vlaneseq
    %v509 = vshrl.u32 %v508, 7
    %v510 = vsub.s32 0, %v509
    %v511 = vrot.slane %v506, %v510
    %v513 = vadd.f32 %v488, %v511
    %v514 = vadd.f32 %v492, %v511
    %v515 = vadd.f32 %v498, %v511
    %v516 = vadd.f32 %v502, %v511
    %v517 = vpack.c.bf16 %v514, %v513
    %v518 = vpack.c.bf16 %v516, %v515
    %v521 = vunpack.c.l.b16 %v517
    %v522 = vunpack.c.h.b16 %v517
    %v523 = vunpack.c.l.b16 %v518
    %v524 = vunpack.c.h.b16 %v518
    %v525 = vpack.c.b16 %v521, %v521
    %v526 = vpack.c.b16 %v522, %v522
    %v527 = vpack.c.b16 %v523, %v523
    %v528 = vpack.c.b16 %v524, %v524
    %533 = vst [vmem:[#allocation6] sm:$0xf] %v525
    %534 = vst [vmem:[#allocation6 + $0x4] sm:$0xf] %v526
    %535 = vst [vmem:[#allocation6 + $0x8] sm:$0xf] %v527
    %536 = vst [vmem:[#allocation6 + $0xc] sm:$0xf] %v528
    %v537 = vpack.c.bf16 %v494, %v490
    %v538 = vpack.c.bf16 %v504, %v500
    %v541 = vunpack.c.l.b16 %v537
    %v542 = vunpack.c.h.b16 %v537
    %v543 = vunpack.c.l.b16 %v538
    %v544 = vunpack.c.h.b16 %v538
    %v545 = vpack.c.b16 %v541, %v541
    %v546 = vpack.c.b16 %v542, %v542
    %v547 = vpack.c.b16 %v543, %v543
    %v548 = vpack.c.b16 %v544, %v544
    %553 = vst [vmem:[#allocation6 + $0x10] sm:$0xf] %v545
    %554 = vst [vmem:[#allocation6 + $0x14] sm:$0xf] %v546
    %555 = vst [vmem:[#allocation6 + $0x18] sm:$0xf] %v547
    %556 = vst [vmem:[#allocation6 + $0x1c] sm:$0xf] %v548
    %v557 = vmul.f32 %v351, %v351
    %v558 = vmul.f32 %v352, %v352
    %v559 = vmul.f32 %v353, %v353
    %v560 = vmul.f32 %v354, %v354
    %561 = vmatprep.subr.mxu0 0.0
    %562 = vmatpush1.msra.mxu0 0.0
    %563 = vmatprep.subr.mxu0 0.0
    %564 = vmatpush1.msra.mxu0 0.0
    %565 = vmatprep.subr.mxu0 0.0
    %566 = vmatpush1.msra.mxu0 0.0
    %567 = vmatprep.subr.mxu0 0.0
    %568 = vmatpush1.msra.mxu0 0.0
    %569 = vmatprep.subr.mxu0 0.0
    %570 = vmatpush1.msra.mxu0 0.0
    %571 = vmatprep.subr.mxu0 0.0
    %572 = vmatpush1.msra.mxu0 0.0
    %573 = vmatprep.subr.mxu0 0.0
    %574 = vmatpush1.msra.mxu0 0.0
    %575 = vmatprep.subr.mxu0 0.0
    %576 = vmatpush1.msra.mxu0 0.0
    %577 = vmatprep.subr.mxu0 0.0
    %578 = vmatpush1.msra.mxu0 0.0
    %579 = vmatprep.subr.mxu0 0.0
    %580 = vmatpush1.msra.mxu0 0.0
    %581 = vmatprep.subr.mxu0 0.0
    %582 = vmatpush1.msra.mxu0 0.0
    %583 = vmatprep.subr.mxu0 0.0
    %584 = vmatpush1.msra.mxu0 0.0
    %585 = vmatprep.subr.mxu0 %v560
    %586 = vmatpush1.msra.mxu0 %v354
    %587 = vmatprep.subr.mxu0 %v559
    %588 = vmatpush1.msra.mxu0 %v353
    %589 = vmatprep.subr.mxu0 %v558
    %590 = vmatpush1.msra.mxu0 %v352
    %591 = vmatprep.subr.mxu0 %v557
    %592 = vmatpush1.msra.mxu0 %v351
    %593 = vmatprep.subr.mxu0 0.0
    %594 = vmatpush2.msra.mxu0 0.0
    %595 = vmatprep.subr.mxu0 0.0
    %596 = vmatpush2.msra.mxu0 0.0
    %597 = vmatprep.subr.mxu0 0.0
    %598 = vmatpush2.msra.mxu0 0.0
    %599 = vmatprep.subr.mxu0 0.0
    %600 = vmatpush2.msra.mxu0 0.0
    %601 = vmatprep.subr.mxu0 0.0
    %602 = vmatpush2.msra.mxu0 0.0
    %603 = vmatprep.subr.mxu0 0.0
    %604 = vmatpush2.msra.mxu0 0.0
    %605 = vmatprep.subr.mxu0 0.0
    %606 = vmatpush2.msra.mxu0 0.0
    %607 = vmatprep.subr.mxu0 0.0
    %608 = vmatpush2.msra.mxu0 0.0
    %609 = vmatprep.subr.mxu0 0.0
    %610 = vmatpush2.msra.mxu0 0.0
    %611 = vmatprep.subr.mxu0 0.0
    %612 = vmatpush2.msra.mxu0 0.0
    %613 = vmatprep.subr.mxu0 0.0
    %614 = vmatpush2.msra.mxu0 0.0
    %615 = vmatprep.subr.mxu0 0.0
    %616 = vmatpush2.msra.mxu0 0.0
    %617 = vmatprep.subr.mxu0 0.0
    %618 = vmatpush2.msra.mxu0 0.0
    %619 = vmatprep.subr.mxu0 0.0
    %620 = vmatpush2.msra.mxu0 0.0
    %621 = vmatprep.subr.mxu0 0.0
    %622 = vmatpush2.msra.mxu0 0.0
    %623 = vmatprep.subr.mxu0 0.0
    %624 = vmatpush2.msra.mxu0 0.0
    %625 = vmatprep.mubr.f32.mxu0 0.0
    %626 = vmatmul.mubr.f32.gmra.mxu0 %v92
    %v627 = vpop.f32.mrf.mxu0
    %v628 = vadd.f32 0.0, %v627
    %v629 = vpop.f32.mrf.mxu0
    %v630 = vadd.f32 0.0, %v629
    %631 = vdwg.mxu0
    %v632 = vmul.f32 %v628, %v168
    %v633 = vsel %vm171, %v632, 0.0
    %634 = vadd.xlane.f32.xlu0 %v633
    %v635 = vpop.xlane.xlu0 %634
    %v636 = vmul.f32 %v635, %v175
    %v637 = vmul.f32 %v630, %v168
    %v638 = vsel %vm171, %v637, 0.0
    %639 = vadd.xlane.f32.xlu0 %v638
    %v640 = vpop.xlane.xlu0 %639
    %v641 = vmul.f32 %v640, %v175
    %v642 = vmul.f32 %v636, %v636
    %v643 = vsub.f32 %v641, %v642
    %v644 = vmax.f32 %v643, 1e-06
    %v645 = vrsqrt.pop %v644
    %v646 = vsel %vm186, %v636, %v645
    %v648 = vsel %vm171, %v646, 0
    %650 = vmatprep.subr.mxu0 0.0
    %651 = vmatpush1.msra.mxu0 0.0
    %652 = vmatprep.subr.mxu0 0.0
    %653 = vmatpush1.msra.mxu0 0.0
    %654 = vmatprep.subr.mxu0 0.0
    %655 = vmatpush1.msra.mxu0 0.0
    %656 = vmatprep.subr.mxu0 0.0
    %657 = vmatpush1.msra.mxu0 0.0
    %658 = vmatprep.subr.mxu0 0.0
    %659 = vmatpush1.msra.mxu0 0.0
    %660 = vmatprep.subr.mxu0 0.0
    %661 = vmatpush1.msra.mxu0 0.0
    %662 = vmatprep.subr.mxu0 0.0
    %663 = vmatpush1.msra.mxu0 0.0
    %664 = vmatprep.subr.mxu0 0.0
    %665 = vmatpush1.msra.mxu0 0.0
    %666 = vmatprep.subr.mxu0 0.0
    %667 = vmatpush1.msra.mxu0 0.0
    %668 = vmatprep.subr.mxu0 0.0
    %669 = vmatpush1.msra.mxu0 0.0
    %670 = vmatprep.subr.mxu0 0.0
    %671 = vmatpush1.msra.mxu0 0.0
    %672 = vmatprep.subr.mxu0 0.0
    %673 = vmatpush1.msra.mxu0 0.0
    %674 = vmatprep.subr.mxu0 0.0
    %675 = vmatpush1.msra.mxu0 0.0
    %676 = vmatprep.subr.mxu0 0.0
    %677 = vmatpush1.msra.mxu0 0.0
    %678 = vmatprep.subr.mxu0 0.0
    %679 = vmatpush1.msra.mxu0 0.0
    %680 = vmatprep.subr.mxu0 0.0
    %681 = vmatpush1.msra.mxu0 %v648
    %682 = vmatprep.subr.mxu0 0.0
    %683 = vmatpush2.msra.mxu0 0.0
    %684 = vmatprep.subr.mxu0 0.0
    %685 = vmatpush2.msra.mxu0 0.0
    %686 = vmatprep.subr.mxu0 0.0
    %687 = vmatpush2.msra.mxu0 0.0
    %688 = vmatprep.subr.mxu0 0.0
    %689 = vmatpush2.msra.mxu0 0.0
    %690 = vmatprep.subr.mxu0 0.0
    %691 = vmatpush2.msra.mxu0 0.0
    %692 = vmatprep.subr.mxu0 0.0
    %693 = vmatpush2.msra.mxu0 0.0
    %694 = vmatprep.subr.mxu0 0.0
    %695 = vmatpush2.msra.mxu0 0.0
    %696 = vmatprep.subr.mxu0 0.0
    %697 = vmatpush2.msra.mxu0 0.0
    %698 = vmatprep.subr.mxu0 0.0
    %699 = vmatpush2.msra.mxu0 0.0
    %700 = vmatprep.subr.mxu0 0.0
    %701 = vmatpush2.msra.mxu0 0.0
    %702 = vmatprep.subr.mxu0 0.0
    %703 = vmatpush2.msra.mxu0 0.0
    %704 = vmatprep.subr.mxu0 0.0
    %705 = vmatpush2.msra.mxu0 0.0
    %706 = vmatprep.subr.mxu0 0.0
    %707 = vmatpush2.msra.mxu0 0.0
    %708 = vmatprep.subr.mxu0 0.0
    %709 = vmatpush2.msra.mxu0 0.0
    %710 = vmatprep.subr.mxu0 0.0
    %711 = vmatpush2.msra.mxu0 0.0
    %712 = vmatprep.subr.mxu0 0.0
    %713 = vmatpush2.msra.mxu0 0.0
    %714 = vmatprep.mubr.f32.mxu0 0.0
    %715 = vmatmul.mubr.f32.gmra.mxu0 %v190
    %v716 = vpop.f32.mrf.mxu0
    %v717 = vadd.f32 0.0, %v716
    %v718 = vpop.f32.mrf.mxu0
    %719 = vmatprep.mubr.f32.mxu0 0.0
    %720 = vmatmul.mubr.f32.gmra.mxu0 %v193
    %v721 = vpop.f32.mrf.mxu0
    %v722 = vadd.f32 0.0, %v721
    %v723 = vpop.f32.mrf.mxu0
    %724 = vmatprep.mubr.f32.mxu0 0.0
    %725 = vmatmul.mubr.f32.gmra.mxu0 %v196
    %v726 = vpop.f32.mrf.mxu0
    %v727 = vadd.f32 0.0, %v726
    %v728 = vpop.f32.mrf.mxu0
    %729 = vmatprep.mubr.f32.mxu0 0.0
    %730 = vmatmul.mubr.f32.gmra.mxu0 %v199
    %v731 = vpop.f32.mrf.mxu0
    %v732 = vadd.f32 0.0, %v731
    %v733 = vpop.f32.mrf.mxu0
    %734 = vdwg.mxu0
    %736 = vset.pattern.permute.xlu0 0
    %737 = vperm.xlu0 %736, %v717
    %v738 = vpop.permute.xlu0 %737
    %741 = vset.pattern.permute.xlu0 0
    %742 = vperm.xlu0 %741, %v722
    %v743 = vpop.permute.xlu0 %742
    %746 = vset.pattern.permute.xlu0 0
    %747 = vperm.xlu0 %746, %v727
    %v748 = vpop.permute.xlu0 %747
    %751 = vset.pattern.permute.xlu0 0
    %752 = vperm.xlu0 %751, %v732
    %v753 = vpop.permute.xlu0 %752
    %v755 = vsub.f32 %v351, %v738
    %v756 = vsub.f32 %v352, %v743
    %v757 = vsub.f32 %v353, %v748
    %v758 = vsub.f32 %v354, %v753
    %759 = vset.pattern.permute.xlu0 1
    %760 = vperm.xlu0 %759, %v717
    %v761 = vpop.permute.xlu0 %760
    %763 = vset.pattern.permute.xlu0 1
    %764 = vperm.xlu0 %763, %v722
    %v765 = vpop.permute.xlu0 %764
    %767 = vset.pattern.permute.xlu0 1
    %768 = vperm.xlu0 %767, %v727
    %v769 = vpop.permute.xlu0 %768
    %771 = vset.pattern.permute.xlu0 1
    %772 = vperm.xlu0 %771, %v732
    %v773 = vpop.permute.xlu0 %772
    %v775 = vmul.f32 %v755, %v761
    %v776 = vmul.f32 %v756, %v765
    %v777 = vmul.f32 %v757, %v769
    %v778 = vmul.f32 %v758, %v773
    %s779 = scalar_lea.vmem %s3, 1
    %v780 = vld [vmem:[%s779] sm:$0x1]
    %v782 = vlaneseq
    %v783 = vshrl.u32 %v782, 7
    %v784 = vsub.s32 0, %v783
    %v785 = vrot.slane %v780, %v784
    %v787 = vmul.f32 %v775, %v785
    %v788 = vmul.f32 %v776, %v785
    %v789 = vmul.f32 %v777, %v785
    %v790 = vmul.f32 %v778, %v785
    %s791 = scalar_lea.vmem %s4, 1
    %v792 = vld [vmem:[%s791] sm:$0x1]
    %v794 = vlaneseq
    %v795 = vshrl.u32 %v794, 7
    %v796 = vsub.s32 0, %v795
    %v797 = vrot.slane %v792, %v796
    %v799 = vadd.f32 %v787, %v797
    %v800 = vadd.f32 %v788, %v797
    %v801 = vadd.f32 %v789, %v797
    %v802 = vadd.f32 %v790, %v797
    %v803 = vpack.c.bf16 %v800, %v799
    %v804 = vpack.c.bf16 %v802, %v801
    %s805 = scalar_lea.vmem [#allocation2], 128
    %v806 = vld [vmem:[%s805] sm:$0xff]
    %v807 = vld [vmem:[%s805 + $0x8] sm:$0xff]
    %v808 = vld [vmem:[%s805 + $0x10] sm:$0xff]
    %v809 = vld [vmem:[%s805 + $0x18] sm:$0xff]
    %v810 = vld [vmem:[%s805 + $0x20] sm:$0xff]
    %v811 = vld [vmem:[%s805 + $0x28] sm:$0xff]
    %v812 = vld [vmem:[%s805 + $0x30] sm:$0xff]
    %v813 = vld [vmem:[%s805 + $0x38] sm:$0xff]
    %v814 = vld [vmem:[%s805 + $0x40] sm:$0xff]
    %v815 = vld [vmem:[%s805 + $0x48] sm:$0xff]
    %v816 = vld [vmem:[%s805 + $0x50] sm:$0xff]
    %v817 = vld [vmem:[%s805 + $0x58] sm:$0xff]
    %v818 = vld [vmem:[%s805 + $0x60] sm:$0xff]
    %v819 = vld [vmem:[%s805 + $0x68] sm:$0xff]
    %v820 = vld [vmem:[%s805 + $0x70] sm:$0xff]
    %v821 = vld [vmem:[%s805 + $0x78] sm:$0xff]
    %v838 = vunpack.c.l.b16 %v806
    %v839 = vunpack.c.h.b16 %v806
    %v840 = vunpack.c.l.b16 %v807
    %v841 = vunpack.c.h.b16 %v807
    %v842 = vunpack.c.l.b16 %v808
    %v843 = vunpack.c.h.b16 %v808
    %v844 = vunpack.c.l.b16 %v809
    %v845 = vunpack.c.h.b16 %v809
    %v846 = vunpack.c.l.b16 %v810
    %v847 = vunpack.c.h.b16 %v810
    %v848 = vunpack.c.l.b16 %v811
    %v849 = vunpack.c.h.b16 %v811
    %v850 = vunpack.c.l.b16 %v812
    %v851 = vunpack.c.h.b16 %v812
    %v852 = vunpack.c.l.b16 %v813
    %v853 = vunpack.c.h.b16 %v813
    %v854 = vunpack.c.l.b16 %v814
    %v855 = vunpack.c.h.b16 %v814
    %v856 = vunpack.c.l.b16 %v815
    %v857 = vunpack.c.h.b16 %v815
    %v858 = vunpack.c.l.b16 %v816
    %v859 = vunpack.c.h.b16 %v816
    %v860 = vunpack.c.l.b16 %v817
    %v861 = vunpack.c.h.b16 %v817
    %v862 = vunpack.c.l.b16 %v818
    %v863 = vunpack.c.h.b16 %v818
    %v864 = vunpack.c.l.b16 %v819
    %v865 = vunpack.c.h.b16 %v819
    %v866 = vunpack.c.l.b16 %v820
    %v867 = vunpack.c.h.b16 %v820
    %v868 = vunpack.c.l.b16 %v821
    %v869 = vunpack.c.h.b16 %v821
    %v870 = vpack.c.b16 %v840, %v838
    %v871 = vpack.c.b16 %v841, %v839
    %v872 = vpack.c.b16 %v844, %v842
    %v873 = vpack.c.b16 %v845, %v843
    %v874 = vpack.c.b16 %v848, %v846
    %v875 = vpack.c.b16 %v849, %v847
    %v876 = vpack.c.b16 %v852, %v850
    %v877 = vpack.c.b16 %v853, %v851
    %v878 = vpack.c.b16 %v856, %v854
    %v879 = vpack.c.b16 %v857, %v855
    %v880 = vpack.c.b16 %v860, %v858
    %v881 = vpack.c.b16 %v861, %v859
    %v882 = vpack.c.b16 %v864, %v862
    %v883 = vpack.c.b16 %v865, %v863
    %v884 = vpack.c.b16 %v868, %v866
    %v885 = vpack.c.b16 %v869, %v867
    %902 = vmatprep.subr.bf16.mxu0 %v885
    %903 = vmatpush1.bf16.msra.mxu0 %v884
    %904 = vmatprep.subr.bf16.mxu0 %v883
    %905 = vmatpush1.bf16.msra.mxu0 %v882
    %906 = vmatprep.subr.bf16.mxu0 %v881
    %907 = vmatpush1.bf16.msra.mxu0 %v880
    %908 = vmatprep.subr.bf16.mxu0 %v879
    %909 = vmatpush1.bf16.msra.mxu0 %v878
    %910 = vmatprep.subr.bf16.mxu0 %v877
    %911 = vmatpush1.bf16.msra.mxu0 %v876
    %912 = vmatprep.subr.bf16.mxu0 %v875
    %913 = vmatpush1.bf16.msra.mxu0 %v874
    %914 = vmatprep.subr.bf16.mxu0 %v873
    %915 = vmatpush1.bf16.msra.mxu0 %v872
    %916 = vmatprep.subr.bf16.mxu0 %v871
    %917 = vmatpush1.bf16.msra.mxu0 %v870
    %918 = vmatprep.subr.bf16.mxu0 0
    %919 = vmatpush2.bf16.msra.mxu0 0
    %920 = vmatprep.subr.bf16.mxu0 0
    %921 = vmatpush2.bf16.msra.mxu0 0
    %922 = vmatprep.subr.bf16.mxu0 0
    %923 = vmatpush2.bf16.msra.mxu0 0
    %924 = vmatprep.subr.bf16.mxu0 0
    %925 = vmatpush2.bf16.msra.mxu0 0
    %926 = vmatprep.subr.bf16.mxu0 0
    %927 = vmatpush2.bf16.msra.mxu0 0
    %928 = vmatprep.subr.bf16.mxu0 0
    %929 = vmatpush2.bf16.msra.mxu0 0
    %930 = vmatprep.subr.bf16.mxu0 0
    %931 = vmatpush2.bf16.msra.mxu0 0
    %932 = vmatprep.subr.bf16.mxu0 0
    %933 = vmatpush2.bf16.msra.mxu0 0
    %934 = vmatprep.mubr.bf16.mxu0 0
    %935 = vmatmul.mubr.bf16.gmra.mxu0 %v803
    %v936 = vpop.f32.mrf.mxu0
    %v937 = vadd.f32 0.0, %v936
    %v938 = vpop.f32.mrf.mxu0
    %v939 = vadd.f32 0.0, %v938
    %v940 = vpop.f32.mrf.mxu0
    %v941 = vadd.f32 0.0, %v940
    %v942 = vpop.f32.mrf.mxu0
    %v943 = vadd.f32 0.0, %v942
    %944 = vmatprep.mubr.bf16.mxu0 0
    %945 = vmatmul.mubr.bf16.gmra.mxu0 %v804
    %v946 = vpop.f32.mrf.mxu0
    %v947 = vadd.f32 0.0, %v946
    %v948 = vpop.f32.mrf.mxu0
    %v949 = vadd.f32 0.0, %v948
    %v950 = vpop.f32.mrf.mxu0
    %v951 = vadd.f32 0.0, %v950
    %v952 = vpop.f32.mrf.mxu0
    %v953 = vadd.f32 0.0, %v952
    %954 = vdwg.mxu0
    %s955 = scalar_lea.vmem %s6, 1
    %v956 = vld [vmem:[%s955] sm:$0x1]
    %v958 = vlaneseq
    %v959 = vshrl.u32 %v958, 7
    %v960 = vsub.s32 0, %v959
    %v961 = vrot.slane %v956, %v960
    %v963 = vadd.f32 %v937, %v961
    %v964 = vadd.f32 %v941, %v961
    %v965 = vadd.f32 %v947, %v961
    %v966 = vadd.f32 %v951, %v961
    %v967 = vpack.c.bf16 %v964, %v963
    %v968 = vpack.c.bf16 %v966, %v965
    %v971 = vunpack.c.l.b16 %v967
    %v972 = vunpack.c.h.b16 %v967
    %v973 = vunpack.c.l.b16 %v968
    %v974 = vunpack.c.h.b16 %v968
    %v975 = vpack.c.b16 %v971, %v971
    %v976 = vpack.c.b16 %v972, %v972
    %v977 = vpack.c.b16 %v973, %v973
    %v978 = vpack.c.b16 %v974, %v974
    %s983 = scalar_lea.vmem [#allocation6], 32
    %984 = vst [vmem:[%s983] sm:$0xf] %v975
    %985 = vst [vmem:[%s983 + $0x4] sm:$0xf] %v976
    %986 = vst [vmem:[%s983 + $0x8] sm:$0xf] %v977
    %987 = vst [vmem:[%s983 + $0xc] sm:$0xf] %v978
    %v988 = vpack.c.bf16 %v943, %v939
    %v989 = vpack.c.bf16 %v953, %v949
    %v992 = vunpack.c.l.b16 %v988
    %v993 = vunpack.c.h.b16 %v988
    %v994 = vunpack.c.l.b16 %v989
    %v995 = vunpack.c.h.b16 %v989
    %v996 = vpack.c.b16 %v992, %v992
    %v997 = vpack.c.b16 %v993, %v993
    %v998 = vpack.c.b16 %v994, %v994
    %v999 = vpack.c.b16 %v995, %v995
    %1004 = vst [vmem:[%s983 + $0x10] sm:$0xf] %v996
    %1005 = vst [vmem:[%s983 + $0x14] sm:$0xf] %v997
    %1006 = vst [vmem:[%s983 + $0x18] sm:$0xf] %v998
    %1007 = vst [vmem:[%s983 + $0x1c] sm:$0xf] %v999
    %v1008 = vmul.f32 %v799, %v799
    %v1009 = vmul.f32 %v800, %v800
    %v1010 = vmul.f32 %v801, %v801
    %v1011 = vmul.f32 %v802, %v802
    %1012 = vmatprep.subr.mxu0 0.0
    %1013 = vmatpush1.msra.mxu0 0.0
    %1014 = vmatprep.subr.mxu0 0.0
    %1015 = vmatpush1.msra.mxu0 0.0
    %1016 = vmatprep.subr.mxu0 0.0
    %1017 = vmatpush1.msra.mxu0 0.0
    %1018 = vmatprep.subr.mxu0 0.0
    %1019 = vmatpush1.msra.mxu0 0.0
    %1020 = vmatprep.subr.mxu0 0.0
    %1021 = vmatpush1.msra.mxu0 0.0
    %1022 = vmatprep.subr.mxu0 0.0
    %1023 = vmatpush1.msra.mxu0 0.0
    %1024 = vmatprep.subr.mxu0 0.0
    %1025 = vmatpush1.msra.mxu0 0.0
    %1026 = vmatprep.subr.mxu0 0.0
    %1027 = vmatpush1.msra.mxu0 0.0
    %1028 = vmatprep.subr.mxu0 0.0
    %1029 = vmatpush1.msra.mxu0 0.0
    %1030 = vmatprep.subr.mxu0 0.0
    %1031 = vmatpush1.msra.mxu0 0.0
    %1032 = vmatprep.subr.mxu0 0.0
    %1033 = vmatpush1.msra.mxu0 0.0
    %1034 = vmatprep.subr.mxu0 0.0
    %1035 = vmatpush1.msra.mxu0 0.0
    %1036 = vmatprep.subr.mxu0 %v1011
    %1037 = vmatpush1.msra.mxu0 %v802
    %1038 = vmatprep.subr.mxu0 %v1010
    %1039 = vmatpush1.msra.mxu0 %v801
    %1040 = vmatprep.subr.mxu0 %v1009
    %1041 = vmatpush1.msra.mxu0 %v800
    %1042 = vmatprep.subr.mxu0 %v1008
    %1043 = vmatpush1.msra.mxu0 %v799
    %1044 = vmatprep.subr.mxu0 0.0
    %1045 = vmatpush2.msra.mxu0 0.0
    %1046 = vmatprep.subr.mxu0 0.0
    %1047 = vmatpush2.msra.mxu0 0.0
    %1048 = vmatprep.subr.mxu0 0.0
    %1049 = vmatpush2.msra.mxu0 0.0
    %1050 = vmatprep.subr.mxu0 0.0
    %1051 = vmatpush2.msra.mxu0 0.0
    %1052 = vmatprep.subr.mxu0 0.0
    %1053 = vmatpush2.msra.mxu0 0.0
    %1054 = vmatprep.subr.mxu0 0.0
    %1055 = vmatpush2.msra.mxu0 0.0
    %1056 = vmatprep.subr.mxu0 0.0
    %1057 = vmatpush2.msra.mxu0 0.0
    %1058 = vmatprep.subr.mxu0 0.0
    %1059 = vmatpush2.msra.mxu0 0.0
    %1060 = vmatprep.subr.mxu0 0.0
    %1061 = vmatpush2.msra.mxu0 0.0
    %1062 = vmatprep.subr.mxu0 0.0
    %1063 = vmatpush2.msra.mxu0 0.0
    %1064 = vmatprep.subr.mxu0 0.0
    %1065 = vmatpush2.msra.mxu0 0.0
    %1066 = vmatprep.subr.mxu0 0.0
    %1067 = vmatpush2.msra.mxu0 0.0
    %1068 = vmatprep.subr.mxu0 0.0
    %1069 = vmatpush2.msra.mxu0 0.0
    %1070 = vmatprep.subr.mxu0 0.0
    %1071 = vmatpush2.msra.mxu0 0.0
    %1072 = vmatprep.subr.mxu0 0.0
    %1073 = vmatpush2.msra.mxu0 0.0
    %1074 = vmatprep.subr.mxu0 0.0
    %1075 = vmatpush2.msra.mxu0 0.0
    %1076 = vmatprep.mubr.f32.mxu0 0.0
    %1077 = vmatmul.mubr.f32.gmra.mxu0 %v92
    %v1078 = vpop.f32.mrf.mxu0
    %v1079 = vadd.f32 0.0, %v1078
    %v1080 = vpop.f32.mrf.mxu0
    %v1081 = vadd.f32 0.0, %v1080
    %1082 = vdwg.mxu0
    %v1083 = vmul.f32 %v1079, %v168
    %v1084 = vsel %vm171, %v1083, 0.0
    %1085 = vadd.xlane.f32.xlu0 %v1084
    %v1086 = vpop.xlane.xlu0 %1085
    %v1087 = vmul.f32 %v1086, %v175
    %v1088 = vmul.f32 %v1081, %v168
    %v1089 = vsel %vm171, %v1088, 0.0
    %1090 = vadd.xlane.f32.xlu0 %v1089
    %v1091 = vpop.xlane.xlu0 %1090
    %v1092 = vmul.f32 %v1091, %v175
    %v1093 = vmul.f32 %v1087, %v1087
    %v1094 = vsub.f32 %v1092, %v1093
    %v1095 = vmax.f32 %v1094, 1e-06
    %v1096 = vrsqrt.pop %v1095
    %v1097 = vsel %vm186, %v1087, %v1096
    %v1099 = vsel %vm171, %v1097, 0
    %1101 = vmatprep.subr.mxu0 0.0
    %1102 = vmatpush1.msra.mxu0 0.0
    %1103 = vmatprep.subr.mxu0 0.0
    %1104 = vmatpush1.msra.mxu0 0.0
    %1105 = vmatprep.subr.mxu0 0.0
    %1106 = vmatpush1.msra.mxu0 0.0
    %1107 = vmatprep.subr.mxu0 0.0
    %1108 = vmatpush1.msra.mxu0 0.0
    %1109 = vmatprep.subr.mxu0 0.0
    %1110 = vmatpush1.msra.mxu0 0.0
    %1111 = vmatprep.subr.mxu0 0.0
    %1112 = vmatpush1.msra.mxu0 0.0
    %1113 = vmatprep.subr.mxu0 0.0
    %1114 = vmatpush1.msra.mxu0 0.0
    %1115 = vmatprep.subr.mxu0 0.0
    %1116 = vmatpush1.msra.mxu0 0.0
    %1117 = vmatprep.subr.mxu0 0.0
    %1118 = vmatpush1.msra.mxu0 0.0
    %1119 = vmatprep.subr.mxu0 0.0
    %1120 = vmatpush1.msra.mxu0 0.0
    %1121 = vmatprep.subr.mxu0 0.0
    %1122 = vmatpush1.msra.mxu0 0.0
    %1123 = vmatprep.subr.mxu0 0.0
    %1124 = vmatpush1.msra.mxu0 0.0
    %1125 = vmatprep.subr.mxu0 0.0
    %1126 = vmatpush1.msra.mxu0 0.0
    %1127 = vmatprep.subr.mxu0 0.0
    %1128 = vmatpush1.msra.mxu0 0.0
    %1129 = vmatprep.subr.mxu0 0.0
    %1130 = vmatpush1.msra.mxu0 0.0
    %1131 = vmatprep.subr.mxu0 0.0
    %1132 = vmatpush1.msra.mxu0 %v1099
    %1133 = vmatprep.subr.mxu0 0.0
    %1134 = vmatpush2.msra.mxu0 0.0
    %1135 = vmatprep.subr.mxu0 0.0
    %1136 = vmatpush2.msra.mxu0 0.0
    %1137 = vmatprep.subr.mxu0 0.0
    %1138 = vmatpush2.msra.mxu0 0.0
    %1139 = vmatprep.subr.mxu0 0.0
    %1140 = vmatpush2.msra.mxu0 0.0
    %1141 = vmatprep.subr.mxu0 0.0
    %1142 = vmatpush2.msra.mxu0 0.0
    %1143 = vmatprep.subr.mxu0 0.0
    %1144 = vmatpush2.msra.mxu0 0.0
    %1145 = vmatprep.subr.mxu0 0.0
    %1146 = vmatpush2.msra.mxu0 0.0
    %1147 = vmatprep.subr.mxu0 0.0
    %1148 = vmatpush2.msra.mxu0 0.0
    %1149 = vmatprep.subr.mxu0 0.0
    %1150 = vmatpush2.msra.mxu0 0.0
    %1151 = vmatprep.subr.mxu0 0.0
    %1152 = vmatpush2.msra.mxu0 0.0
    %1153 = vmatprep.subr.mxu0 0.0
    %1154 = vmatpush2.msra.mxu0 0.0
    %1155 = vmatprep.subr.mxu0 0.0
    %1156 = vmatpush2.msra.mxu0 0.0
    %1157 = vmatprep.subr.mxu0 0.0
    %1158 = vmatpush2.msra.mxu0 0.0
    %1159 = vmatprep.subr.mxu0 0.0
    %1160 = vmatpush2.msra.mxu0 0.0
    %1161 = vmatprep.subr.mxu0 0.0
    %1162 = vmatpush2.msra.mxu0 0.0
    %1163 = vmatprep.subr.mxu0 0.0
    %1164 = vmatpush2.msra.mxu0 0.0
    %1165 = vmatprep.mubr.f32.mxu0 0.0
    %1166 = vmatmul.mubr.f32.gmra.mxu0 %v190
    %v1167 = vpop.f32.mrf.mxu0
    %v1168 = vadd.f32 0.0, %v1167
    %v1169 = vpop.f32.mrf.mxu0
    %1170 = vmatprep.mubr.f32.mxu0 0.0
    %1171 = vmatmul.mubr.f32.gmra.mxu0 %v193
    %v1172 = vpop.f32.mrf.mxu0
    %v1173 = vadd.f32 0.0, %v1172
    %v1174 = vpop.f32.mrf.mxu0
    %1175 = vmatprep.mubr.f32.mxu0 0.0
    %1176 = vmatmul.mubr.f32.gmra.mxu0 %v196
    %v1177 = vpop.f32.mrf.mxu0
    %v1178 = vadd.f32 0.0, %v1177
    %v1179 = vpop.f32.mrf.mxu0
    %1180 = vmatprep.mubr.f32.mxu0 0.0
    %1181 = vmatmul.mubr.f32.gmra.mxu0 %v199
    %v1182 = vpop.f32.mrf.mxu0
    %v1183 = vadd.f32 0.0, %v1182
    %v1184 = vpop.f32.mrf.mxu0
    %1185 = vdwg.mxu0
    %1187 = vset.pattern.permute.xlu0 0
    %1188 = vperm.xlu0 %1187, %v1168
    %v1189 = vpop.permute.xlu0 %1188
    %1192 = vset.pattern.permute.xlu0 0
    %1193 = vperm.xlu0 %1192, %v1173
    %v1194 = vpop.permute.xlu0 %1193
    %1197 = vset.pattern.permute.xlu0 0
    %1198 = vperm.xlu0 %1197, %v1178
    %v1199 = vpop.permute.xlu0 %1198
    %1202 = vset.pattern.permute.xlu0 0
    %1203 = vperm.xlu0 %1202, %v1183
    %v1204 = vpop.permute.xlu0 %1203
    %v1206 = vsub.f32 %v799, %v1189
    %v1207 = vsub.f32 %v800, %v1194
    %v1208 = vsub.f32 %v801, %v1199
    %v1209 = vsub.f32 %v802, %v1204
    %1210 = vset.pattern.permute.xlu0 1
    %1211 = vperm.xlu0 %1210, %v1168
    %v1212 = vpop.permute.xlu0 %1211
    %1214 = vset.pattern.permute.xlu0 1
    %1215 = vperm.xlu0 %1214, %v1173
    %v1216 = vpop.permute.xlu0 %1215
    %1218 = vset.pattern.permute.xlu0 1
    %1219 = vperm.xlu0 %1218, %v1178
    %v1220 = vpop.permute.xlu0 %1219
    %1222 = vset.pattern.permute.xlu0 1
    %1223 = vperm.xlu0 %1222, %v1183
    %v1224 = vpop.permute.xlu0 %1223
    %v1226 = vmul.f32 %v1206, %v1212
    %v1227 = vmul.f32 %v1207, %v1216
    %v1228 = vmul.f32 %v1208, %v1220
    %v1229 = vmul.f32 %v1209, %v1224
    %s1230 = scalar_lea.vmem %s3, 2
    %v1231 = vld [vmem:[%s1230] sm:$0x1]
    %v1233 = vlaneseq
    %v1234 = vshrl.u32 %v1233, 7
    %v1235 = vsub.s32 0, %v1234
    %v1236 = vrot.slane %v1231, %v1235
    %v1238 = vmul.f32 %v1226, %v1236
    %v1239 = vmul.f32 %v1227, %v1236
    %v1240 = vmul.f32 %v1228, %v1236
    %v1241 = vmul.f32 %v1229, %v1236
    %s1242 = scalar_lea.vmem %s4, 2
    %v1243 = vld [vmem:[%s1242] sm:$0x1]
    %v1245 = vlaneseq
    %v1246 = vshrl.u32 %v1245, 7
    %v1247 = vsub.s32 0, %v1246
    %v1248 = vrot.slane %v1243, %v1247
    %v1250 = vadd.f32 %v1238, %v1248
    %v1251 = vadd.f32 %v1239, %v1248
    %v1252 = vadd.f32 %v1240, %v1248
    %v1253 = vadd.f32 %v1241, %v1248
    %v1254 = vpack.c.bf16 %v1251, %v1250
    %v1255 = vpack.c.bf16 %v1253, %v1252
    %s1256 = scalar_lea.vmem [#allocation2], 256
    %v1257 = vld [vmem:[%s1256] sm:$0xff]
    %v1258 = vld [vmem:[%s1256 + $0x8] sm:$0xff]
    %v1259 = vld [vmem:[%s1256 + $0x10] sm:$0xff]
    %v1260 = vld [vmem:[%s1256 + $0x18] sm:$0xff]
    %v1261 = vld [vmem:[%s1256 + $0x20] sm:$0xff]
    %v1262 = vld [vmem:[%s1256 + $0x28] sm:$0xff]
    %v1263 = vld [vmem:[%s1256 + $0x30] sm:$0xff]
    %v1264 = vld [vmem:[%s1256 + $0x38] sm:$0xff]
    %v1265 = vld [vmem:[%s1256 + $0x40] sm:$0xff]
    %v1266 = vld [vmem:[%s1256 + $0x48] sm:$0xff]
    %v1267 = vld [vmem:[%s1256 + $0x50] sm:$0xff]
    %v1268 = vld [vmem:[%s1256 + $0x58] sm:$0xff]
    %v1269 = vld [vmem:[%s1256 + $0x60] sm:$0xff]
    %v1270 = vld [vmem:[%s1256 + $0x68] sm:$0xff]
    %v1271 = vld [vmem:[%s1256 + $0x70] sm:$0xff]
    %v1272 = vld [vmem:[%s1256 + $0x78] sm:$0xff]
    %v1289 = vunpack.c.l.b16 %v1257
    %v1290 = vunpack.c.h.b16 %v1257
    %v1291 = vunpack.c.l.b16 %v1258
    %v1292 = vunpack.c.h.b16 %v1258
    %v1293 = vunpack.c.l.b16 %v1259
    %v1294 = vunpack.c.h.b16 %v1259
    %v1295 = vunpack.c.l.b16 %v1260
    %v1296 = vunpack.c.h.b16 %v1260
    %v1297 = vunpack.c.l.b16 %v1261
    %v1298 = vunpack.c.h.b16 %v1261
    %v1299 = vunpack.c.l.b16 %v1262
    %v1300 = vunpack.c.h.b16 %v1262
    %v1301 = vunpack.c.l.b16 %v1263
    %v1302 = vunpack.c.h.b16 %v1263
    %v1303 = vunpack.c.l.b16 %v1264
    %v1304 = vunpack.c.h.b16 %v1264
    %v1305 = vunpack.c.l.b16 %v1265
    %v1306 = vunpack.c.h.b16 %v1265
    %v1307 = vunpack.c.l.b16 %v1266
    %v1308 = vunpack.c.h.b16 %v1266
    %v1309 = vunpack.c.l.b16 %v1267
    %v1310 = vunpack.c.h.b16 %v1267
    %v1311 = vunpack.c.l.b16 %v1268
    %v1312 = vunpack.c.h.b16 %v1268
    %v1313 = vunpack.c.l.b16 %v1269
    %v1314 = vunpack.c.h.b16 %v1269
    %v1315 = vunpack.c.l.b16 %v1270
    %v1316 = vunpack.c.h.b16 %v1270
    %v1317 = vunpack.c.l.b16 %v1271
    %v1318 = vunpack.c.h.b16 %v1271
    %v1319 = vunpack.c.l.b16 %v1272
    %v1320 = vunpack.c.h.b16 %v1272
    %v1321 = vpack.c.b16 %v1291, %v1289
    %v1322 = vpack.c.b16 %v1292, %v1290
    %v1323 = vpack.c.b16 %v1295, %v1293
    %v1324 = vpack.c.b16 %v1296, %v1294
    %v1325 = vpack.c.b16 %v1299, %v1297
    %v1326 = vpack.c.b16 %v1300, %v1298
    %v1327 = vpack.c.b16 %v1303, %v1301
    %v1328 = vpack.c.b16 %v1304, %v1302
    %v1329 = vpack.c.b16 %v1307, %v1305
    %v1330 = vpack.c.b16 %v1308, %v1306
    %v1331 = vpack.c.b16 %v1311, %v1309
    %v1332 = vpack.c.b16 %v1312, %v1310
    %v1333 = vpack.c.b16 %v1315, %v1313
    %v1334 = vpack.c.b16 %v1316, %v1314
    %v1335 = vpack.c.b16 %v1319, %v1317
    %v1336 = vpack.c.b16 %v1320, %v1318
    %1353 = vmatprep.subr.bf16.mxu0 %v1336
    %1354 = vmatpush1.bf16.msra.mxu0 %v1335
    %1355 = vmatprep.subr.bf16.mxu0 %v1334
    %1356 = vmatpush1.bf16.msra.mxu0 %v1333
    %1357 = vmatprep.subr.bf16.mxu0 %v1332
    %1358 = vmatpush1.bf16.msra.mxu0 %v1331
    %1359 = vmatprep.subr.bf16.mxu0 %v1330
    %1360 = vmatpush1.bf16.msra.mxu0 %v1329
    %1361 = vmatprep.subr.bf16.mxu0 %v1328
    %1362 = vmatpush1.bf16.msra.mxu0 %v1327
    %1363 = vmatprep.subr.bf16.mxu0 %v1326
    %1364 = vmatpush1.bf16.msra.mxu0 %v1325
    %1365 = vmatprep.subr.bf16.mxu0 %v1324
    %1366 = vmatpush1.bf16.msra.mxu0 %v1323
    %1367 = vmatprep.subr.bf16.mxu0 %v1322
    %1368 = vmatpush1.bf16.msra.mxu0 %v1321
    %1369 = vmatprep.subr.bf16.mxu0 0
    %1370 = vmatpush2.bf16.msra.mxu0 0
    %1371 = vmatprep.subr.bf16.mxu0 0
    %1372 = vmatpush2.bf16.msra.mxu0 0
    %1373 = vmatprep.subr.bf16.mxu0 0
    %1374 = vmatpush2.bf16.msra.mxu0 0
    %1375 = vmatprep.subr.bf16.mxu0 0
    %1376 = vmatpush2.bf16.msra.mxu0 0
    %1377 = vmatprep.subr.bf16.mxu0 0
    %1378 = vmatpush2.bf16.msra.mxu0 0
    %1379 = vmatprep.subr.bf16.mxu0 0
    %1380 = vmatpush2.bf16.msra.mxu0 0
    %1381 = vmatprep.subr.bf16.mxu0 0
    %1382 = vmatpush2.bf16.msra.mxu0 0
    %1383 = vmatprep.subr.bf16.mxu0 0
    %1384 = vmatpush2.bf16.msra.mxu0 0
    %1385 = vmatprep.mubr.bf16.mxu0 0
    %1386 = vmatmul.mubr.bf16.gmra.mxu0 %v1254
    %v1387 = vpop.f32.mrf.mxu0
    %v1388 = vadd.f32 0.0, %v1387
    %v1389 = vpop.f32.mrf.mxu0
    %v1390 = vadd.f32 0.0, %v1389
    %v1391 = vpop.f32.mrf.mxu0
    %v1392 = vadd.f32 0.0, %v1391
    %v1393 = vpop.f32.mrf.mxu0
    %v1394 = vadd.f32 0.0, %v1393
    %1395 = vmatprep.mubr.bf16.mxu0 0
    %1396 = vmatmul.mubr.bf16.gmra.mxu0 %v1255
    %v1397 = vpop.f32.mrf.mxu0
    %v1398 = vadd.f32 0.0, %v1397
    %v1399 = vpop.f32.mrf.mxu0
    %v1400 = vadd.f32 0.0, %v1399
    %v1401 = vpop.f32.mrf.mxu0
    %v1402 = vadd.f32 0.0, %v1401
    %v1403 = vpop.f32.mrf.mxu0
    %v1404 = vadd.f32 0.0, %v1403
    %1405 = vdwg.mxu0
    %s1406 = scalar_lea.vmem %s6, 2
    %v1407 = vld [vmem:[%s1406] sm:$0x1]
    %v1409 = vlaneseq
    %v1410 = vshrl.u32 %v1409, 7
    %v1411 = vsub.s32 0, %v1410
    %v1412 = vrot.slane %v1407, %v1411
    %v1414 = vadd.f32 %v1388, %v1412
    %v1415 = vadd.f32 %v1392, %v1412
    %v1416 = vadd.f32 %v1398, %v1412
    %v1417 = vadd.f32 %v1402, %v1412
    %v1418 = vpack.c.bf16 %v1415, %v1414
    %v1419 = vpack.c.bf16 %v1417, %v1416
    %v1422 = vunpack.c.l.b16 %v1418
    %v1423 = vunpack.c.h.b16 %v1418
    %v1424 = vunpack.c.l.b16 %v1419
    %v1425 = vunpack.c.h.b16 %v1419
    %v1426 = vpack.c.b16 %v1422, %v1422
    %v1427 = vpack.c.b16 %v1423, %v1423
    %v1428 = vpack.c.b16 %v1424, %v1424
    %v1429 = vpack.c.b16 %v1425, %v1425
    %s1434 = scalar_lea.vmem [#allocation6], 64
    %1435 = vst [vmem:[%s1434] sm:$0xf] %v1426
    %1436 = vst [vmem:[%s1434 + $0x4] sm:$0xf] %v1427
    %1437 = vst [vmem:[%s1434 + $0x8] sm:$0xf] %v1428
    %1438 = vst [vmem:[%s1434 + $0xc] sm:$0xf] %v1429
    %v1439 = vpack.c.bf16 %v1394, %v1390
    %v1440 = vpack.c.bf16 %v1404, %v1400
    %v1443 = vunpack.c.l.b16 %v1439
    %v1444 = vunpack.c.h.b16 %v1439
    %v1445 = vunpack.c.l.b16 %v1440
    %v1446 = vunpack.c.h.b16 %v1440
    %v1447 = vpack.c.b16 %v1443, %v1443
    %v1448 = vpack.c.b16 %v1444, %v1444
    %v1449 = vpack.c.b16 %v1445, %v1445
    %v1450 = vpack.c.b16 %v1446, %v1446
    %1455 = vst [vmem:[%s1434 + $0x10] sm:$0xf] %v1447
    %1456 = vst [vmem:[%s1434 + $0x14] sm:$0xf] %v1448
    %1457 = vst [vmem:[%s1434 + $0x18] sm:$0xf] %v1449
    %1458 = vst [vmem:[%s1434 + $0x1c] sm:$0xf] %v1450
    %1459 = vst [vmem:[#allocation5] sm:$0xff] %v1250
    %1460 = vst [vmem:[#allocation5 + $0x8] sm:$0xff] %v1251
    %1461 = vst [vmem:[#allocation5 + $0x10] sm:$0xff] %v1252
    %1462 = vst [vmem:[#allocation5 + $0x18] sm:$0xff] %v1253
    // Predicated region
    $region34: #{tpu_custom_call.1} parent=1 // pred_check
      _
    $region35: #{tpu_custom_call.1} parent=1 // pred_check_branch
      %1464 = sbr.rel (0) target = $region37
    $region36: #{tpu_custom_call.1} parent=1 // pred_region
      %s1466 = ssub.s32 512, 512
      %1467 = vsyncadd [#allocation4], %s1466
      %s1468 = sshll.u32 [#allocation5], 4
      %s1469 = int_to_ptr.vmem [resolvable:$true] %s1468
      %1474 = dma.vmem_to_hbm [thread:$0]  %s1469, 512, %s7, [#allocation4], 128, 128, 8
    $region37: #{tpu_custom_call.1} parent=1 // pred_fallthru
      _
    // Predicated region
    $region38: #{tpu_custom_call.1} parent=1 // pred_check
      _
    $region39: #{tpu_custom_call.1} parent=1 // pred_check_branch
      %1476 = sbr.rel (0) target = $region41
    $region40: #{tpu_custom_call.1} parent=1 // pred_region
      %s1478 = ssub.s32 1536, 1536
      %1479 = vsyncadd [#allocation7], %s1478
      %s1480 = sshll.u32 [#allocation6], 4
      %s1481 = int_to_ptr.vmem [resolvable:$true] %s1480
      %1486 = dma.vmem_to_hbm [thread:$0]  %s1481, 1536, %s8, [#allocation7], 64, 64, 4
    $region41: #{tpu_custom_call.1} parent=1 // pred_fallthru
      _
    // Predicated region
    $region42: #{tpu_custom_call.1} parent=1 // pred_check
      _
    $region43: #{tpu_custom_call.1} parent=1 // pred_check_branch
      %1488 = sbr.rel (0) target = $region45
    $region44: #{tpu_custom_call.1} parent=1 // pred_region
      %1489 = dma.done [#allocation4], 512
    $region45: #{tpu_custom_call.1} parent=1 // pred_fallthru
      _
    // Predicated region
    $region46: #{tpu_custom_call.1} parent=1 // pred_check
      _
    $region47: #{tpu_custom_call.1} parent=1 // pred_check_branch
      %1491 = sbr.rel (0) target = $region49
    $region48: #{tpu_custom_call.1} parent=1 // pred_region
      %1492 = dma.done [#allocation7], 1536
    $region49: #{tpu_custom_call.1} parent=1 // pred_fallthru
      _
    %1493 = vsyncpa [#allocation3], 1
    %1494 = vsyncpa [#allocation4], 1
    %1495 = vsyncpa [#allocation7], 1

</llo_original>
